<compile_context>
chip_gen: v6e
topology: v6e:2x2x1
jax: 0.10.0
libtpu: 0.0.40
codegen_flags: <defaults>
</compile_context>

<pallas_src>
import jax
import jax.numpy as jnp
from jax.experimental import pallas as pl
from jax.experimental.pallas import tpu as pltpu

NUM_CLASSES = 6
NPAD = 128                      # logits lane-padded to one full 128-lane register
NCLS_PAD = 8                    # logits sublane-padded to one 8-sublane tile

# Synthesized architecture dims.
C_IN, H, W = 4, 16, 16
HW = H * W                      # 256 lanes per image (2 lane-tiles)
C1, C2 = 8, 16                  # conv channel widths
POOL2_N = (H // 4) * (W // 4)   # 16 valid spatial positions after the two pools

# 3x3 taps in (kh, kw) order as (dh, dw) offsets; matches PyTorch conv2d
# (cross-correlation) with padding=1 and the weight packing used below.
TAPS = tuple((dh, dw) for dh in (-1, 0, 1) for dw in (-1, 0, 1))


def _choose_bt(batch):
    """Images per grid step: ~8 amortizes the per-step overhead, but keep >=2
    grid steps when the batch allows so both v7x TensorCores get work."""
    if batch >= 16:
        return 8
    if batch >= 2:
        return max(1, batch // 2)
    return 1


# ----------------------------------------------------------------------------
# Fused forward kernel: conv1+ReLU -> pool1 -> conv2+ReLU -> pool2 -> FC
# ----------------------------------------------------------------------------
def _fused_forward_kernel(x_ref, w1_ref, b1_ref, w2_ref, b2_ref,
                          m1_ref, m2_ref, wfc_ref, bsum_ref, bfc_ref, o_ref):
    # Shapes (N = BT*HW lanes; BT images lane-concatenated, image-major):
    #   x_ref   [C_IN, N]            w1_ref [C1, 9*C_IN]   b1_ref [C1, 1]
    #   m1_ref  [9, N]               w2_ref [C2, 9*C1]     b2_ref [C2, 1]
    #   m2_ref  [9, N]               bfc_ref [8, 1]
    #   wfc_ref [C2, 8, N]   class-expanded FC weight, zero off the 16 pooled lanes
    #   bsum_ref[N, 128]     per-image block indicator: lane n*HW+p -> column n
    #   o_ref   [1, 8, 128]  classes on sublanes, this block's images on lanes
    #
    # LAYOUT INVARIANT (do not break when changing H/W/stride/pooling):
    #  * activations are [channels (sublanes), image-major flattened spatial (lanes)];
    #  * pool1 results are only valid at lanes with i%2==0 and j%2==0; conv2/pool2
    #    results only at i%4==0 and j%4==0.  All other lanes -- and anything a lane
    #    roll drags across an image boundary -- hold garbage that is provably never
    #    read: conv taps are border-masked, and the FC weight / block indicator are
    #    zero everywhere except the valid lanes.
    n_lanes = x_ref.shape[-1]

    def lane_shift(v, s):
        # y[c, p] = v[c, (p + s) mod n_lanes]
        if s % n_lanes == 0:
            return v
        return pltpu.roll(v, shift=(-s) % n_lanes, axis=1)

    def stacked_taps(v, mask_ref, scale):
        # [9*C, N] slab: rows of tap t hold v shifted by (scale*dh, scale*dw),
        # zeroed outside the image (the mask also kills cross-image leakage).
        pieces = []
        for t, (dh, dw) in enumerate(TAPS):
            tap = lane_shift(v, scale * (dh * W + dw))
            if (dh, dw) != (0, 0):
                tap = tap * mask_ref[t:t + 1, :]
            pieces.append(tap)
        return jnp.concatenate(pieces, axis=0)

    # ---- conv1 (3x3, pad=1) + ReLU: one MXU matmul, K = 9*C_IN = 36 ---------
    a1 = jnp.dot(w1_ref[...], stacked_taps(x_ref[...], m1_ref, 1),
                 preferred_element_type=jnp.float32)
    a1 = jnp.maximum(a1 + b1_ref[...], 0.0)                          # [C1, N]

    # ---- maxpool1 2x2/2: results valid at even-even lanes -------------------
    q1 = jnp.maximum(jnp.maximum(a1, lane_shift(a1, 1)),
                     jnp.maximum(lane_shift(a1, W), lane_shift(a1, W + 1)))

    # ---- conv2 (3x3, pad=1) on the scattered 8x8 grid + ReLU: K = 72 --------
    a2 = jnp.dot(w2_ref[...], stacked_taps(q1, m2_ref, 2),
                 preferred_element_type=jnp.float32)
    a2 = jnp.maximum(a2 + b2_ref[...], 0.0)                          # [C2, N]

    # ---- maxpool2 2x2/2: results valid at lanes with i%4==0 and j%4==0 ------
    q2 = jnp.maximum(jnp.maximum(a2, lane_shift(a2, 2)),
                     jnp.maximum(lane_shift(a2, 2 * W), lane_shift(a2, 2 * W + 2)))

    # ---- fully connected -----------------------------------------------------
    # (a) per-lane class partials: contract channels on the VPU against the
    #     class-expanded scattered FC weight (zero off the pooled lanes).
    s = wfc_ref[0] * q2[0:1, :]
    for c in range(1, C2):
        s = s + wfc_ref[c] * q2[c:c + 1, :]                          # [8, N]
    # (b) one MXU matmul (K = N >= 256) sums each image's lanes into lane n.
    logits = jnp.dot(s, bsum_ref[...], preferred_element_type=jnp.float32)
    o_ref[0] = logits + bfc_ref[...]                                 # [8, 128] dense


# ----------------------------------------------------------------------------
# Parameters: deterministic PyTorch-layout init + one-time kernel packing
# ----------------------------------------------------------------------------
def init_params(key):
    k1, k2, k3, k4, k5, k6 = jax.random.split(key, 6)
    return {
        "w1": jax.random.normal(k1, (C1, C_IN, 3, 3), jnp.float32) * 0.1,
        "b1": jax.random.normal(k2, (C1,), jnp.float32) * 0.01,
        "w2": jax.random.normal(k3, (C2, C1, 3, 3), jnp.float32) * 0.1,
        "b2": jax.random.normal(k4, (C2,), jnp.float32) * 0.01,
        "wfc": jax.random.normal(k5, (NUM_CLASSES, C2 * POOL2_N), jnp.float32) * 0.1,
        "bfc": jax.random.normal(k6, (NUM_CLASSES,), jnp.float32) * 0.01,
    }


def _border_mask(dh, dw):
    p = jnp.arange(HW)
    i, j = p // W, p % W
    ok = (i + dh >= 0) & (i + dh < H) & (j + dw >= 0) & (j + dw < W)
    return ok.astype(jnp.float32)


def pack_params(params):
    """One-time conversion of PyTorch-layout params into the kernel layout."""
    # Conv weights: [OC, C, 3, 3] -> [OC, 9*C]; columns ordered (tap, in-channel)
    # to match the sublane-stacked tap slab built in-kernel.
    w1s = jnp.transpose(params["w1"], (0, 2, 3, 1)).reshape(C1, 9 * C_IN)
    w2s = jnp.transpose(params["w2"], (0, 2, 3, 1)).reshape(C2, 9 * C1)
    b1 = params["b1"].reshape(C1, 1)
    b2 = params["b2"].reshape(C2, 1)
    # Border masks for conv1 (offsets dh,dw) and conv2 (offsets 2dh,2dw).
    mask1 = jnp.stack([_border_mask(dh, dw) for dh, dw in TAPS])           # [9, HW]
    mask2 = jnp.stack([_border_mask(2 * dh, 2 * dw) for dh, dw in TAPS])   # [9, HW]
    # FC weight [6, C2*16] (PyTorch flatten order c*16 + a*4 + b) expanded into the
    # scattered lane frame: wfc_sc[c, cls, p] = wfc[cls, c*16+q] if p == src[q] else 0.
    q = jnp.arange(POOL2_N)
    src = (q // 4) * (4 * W) + (q % 4) * 4                    # pooled-twice lanes
    onehot = (jnp.arange(HW)[None, :] == src[:, None]).astype(jnp.float32)   # [16, HW]
    wfc3 = params["wfc"].reshape(NUM_CLASSES, C2, POOL2_N)
    wfc_sc = jnp.einsum("xcq,qp->cxp", wfc3, onehot)                         # [C2, 6, HW]
    wfc_sc = jnp.pad(wfc_sc, ((0, 0), (0, NCLS_PAD - NUM_CLASSES), (0, 0)))  # [C2, 8, HW]
    bfc = jnp.pad(params["bfc"], (0, NCLS_PAD - NUM_CLASSES)).reshape(NCLS_PAD, 1)
    return {"w1": w1s, "b1": b1, "w2": w2s, "b2": b2,
            "mask1": mask1, "mask2": mask2, "wfc": wfc_sc, "bfc": bfc}


# ----------------------------------------------------------------------------
# Forward: one fused pallas_call, gridded over blocks of BT images
# ----------------------------------------------------------------------------
def hand_gesture_cnn_forward(packed, x):
    """x: [B, 4, 16, 16] float32 (NCHW) -> logits [B, 6]."""
    batch = x.shape[0]
    bt = _choose_bt(batch)
    grid = pl.cdiv(batch, bt)
    bpad = grid * bt
    n_lanes = bt * HW

    xr = x.reshape(batch, C_IN, HW).astype(jnp.float32)
    if bpad != batch:
        xr = jnp.pad(xr, ((0, bpad - batch), (0, 0), (0, 0)))
    # Lane-concatenate images: [C_IN, bpad*HW] (one tiny XLA transpose per call).
    xl = jnp.transpose(xr, (1, 0, 2)).reshape(C_IN, bpad * HW)

    # BT-dependent, grid-invariant operands (built once per call, DMA'd once, resident).
    mask1 = jnp.tile(packed["mask1"], (1, bt))                   # [9, N]
    mask2 = jnp.tile(packed["mask2"], (1, bt))                   # [9, N]
    wfc = jnp.tile(packed["wfc"], (1, 1, bt))                    # [C2, 8, N]
    bsum = (jnp.arange(n_lanes)[:, None] // HW ==
            jnp.arange(NPAD)[None, :]).astype(jnp.float32)       # [N, 128]

    out = pl.pallas_call(
        _fused_forward_kernel,
        out_shape=jax.ShapeDtypeStruct((grid, NCLS_PAD, NPAD), jnp.float32),
        grid=(grid,),
        in_specs=[
            pl.BlockSpec((C_IN, n_lanes), lambda g: (0, g)),            # images of step g
            pl.BlockSpec((C1, 9 * C_IN), lambda g: (0, 0)),             # conv1 weight
            pl.BlockSpec((C1, 1), lambda g: (0, 0)),                    # conv1 bias
            pl.BlockSpec((C2, 9 * C1), lambda g: (0, 0)),               # conv2 weight
            pl.BlockSpec((C2, 1), lambda g: (0, 0)),                    # conv2 bias
            pl.BlockSpec((9, n_lanes), lambda g: (0, 0)),               # conv1 border masks
            pl.BlockSpec((9, n_lanes), lambda g: (0, 0)),               # conv2 border masks
            pl.BlockSpec((C2, NCLS_PAD, n_lanes), lambda g: (0, 0, 0)),  # FC weight (scattered)
            pl.BlockSpec((n_lanes, NPAD), lambda g: (0, 0)),            # per-image lane sum
            pl.BlockSpec((NCLS_PAD, 1), lambda g: (0, 0)),              # FC bias
        ],
        out_specs=pl.BlockSpec((1, NCLS_PAD, NPAD), lambda g: (g, 0, 0)),
        compiler_params=pltpu.CompilerParams(
            dimension_semantics=("parallel",)),
    )(xl, packed["w1"], packed["b1"], packed["w2"], packed["b2"],
      mask1, mask2, wfc, bsum, packed["bfc"])

    # out[g, cls, n] holds the logits of image g*bt + n.
    logits = jnp.transpose(out[:, :NUM_CLASSES, :bt], (0, 2, 1))
    return logits.reshape(bpad, NUM_CLASSES)[:batch]


if __name__ == "__main__":
    key = jax.random.PRNGKey(0)
    kx, kp = jax.random.split(key)
    x = jax.random.normal(kx, (2, C_IN, H, W), jnp.float32)
    params = init_params(kp)
    packed = pack_params(params)          # one-time weight re-layout

    fwd = jax.jit(hand_gesture_cnn_forward)
    logits = jax.block_until_ready(fwd(packed, x))

    assert logits.shape == (2, NUM_CLASSES), logits.shape
    assert logits.dtype == jnp.float32
    assert bool(jnp.all(jnp.isfinite(logits)))
    print("KERNEL_OK")
</pallas_src>

<mosaic_0001>
module attributes {stable_mosaic.version = 11 : i64} {
  func.func @_fused_forward_kernel(%arg0: i32, %arg1: memref<4x256xf32, #tpu.memory_space<vmem>>, %arg2: memref<8x36xf32, #tpu.memory_space<vmem>>, %arg3: memref<8x1xf32, #tpu.memory_space<vmem>>, %arg4: memref<16x72xf32, #tpu.memory_space<vmem>>, %arg5: memref<16x1xf32, #tpu.memory_space<vmem>>, %arg6: memref<9x256xf32, #tpu.memory_space<vmem>>, %arg7: memref<9x256xf32, #tpu.memory_space<vmem>>, %arg8: memref<16x8x256xf32, #tpu.memory_space<vmem>>, %arg9: memref<256x128xf32, #tpu.memory_space<vmem>>, %arg10: memref<8x1xf32, #tpu.memory_space<vmem>>, %arg11: memref<1x8x128xf32, #tpu.memory_space<vmem>>) attributes {dimension_semantics = [#tpu.dimension_semantics<parallel>], iteration_bounds = array<i64: 2>, scalar_prefetch = 0 : i64, scratch_operands = 0 : i64, tpu.core_type = #tpu.core_type<tc>, window_params = [{transform_indices = @transform_0, window_bounds = array<i64: 4, 256>}, {pipeline_mode = #tpu.pipeline_mode<synchronous>, transform_indices = @transform_1, window_bounds = array<i64: 8, 36>}, {pipeline_mode = #tpu.pipeline_mode<synchronous>, transform_indices = @transform_2, window_bounds = array<i64: 8, 1>}, {pipeline_mode = #tpu.pipeline_mode<synchronous>, transform_indices = @transform_3, window_bounds = array<i64: 16, 72>}, {pipeline_mode = #tpu.pipeline_mode<synchronous>, transform_indices = @transform_4, window_bounds = array<i64: 16, 1>}, {pipeline_mode = #tpu.pipeline_mode<synchronous>, transform_indices = @transform_5, window_bounds = array<i64: 9, 256>}, {pipeline_mode = #tpu.pipeline_mode<synchronous>, transform_indices = @transform_6, window_bounds = array<i64: 9, 256>}, {pipeline_mode = #tpu.pipeline_mode<synchronous>, transform_indices = @transform_7, window_bounds = array<i64: 16, 8, 256>}, {pipeline_mode = #tpu.pipeline_mode<synchronous>, transform_indices = @transform_8, window_bounds = array<i64: 256, 128>}, {pipeline_mode = #tpu.pipeline_mode<synchronous>, transform_indices = @transform_9, window_bounds = array<i64: 8, 1>}, {transform_indices = @transform_10, window_bounds = array<i64: 1, 8, 128>}]} {
    %c0 = arith.constant 0 : index
    %c0_0 = arith.constant 0 : index
    %0 = vector.load %arg2[%c0, %c0_0] : memref<8x36xf32, #tpu.memory_space<vmem>>, vector<8x36xf32>
    %c0_1 = arith.constant 0 : index
    %c0_2 = arith.constant 0 : index
    %1 = vector.load %arg1[%c0_1, %c0_2] : memref<4x256xf32, #tpu.memory_space<vmem>>, vector<4x256xf32>
    %c17_i32 = arith.constant 17 : i32
    %2 = tpu.dynamic_rotate %1 by %c17_i32 dim 1 : vector<4x256xf32>, i32 -> vector<4x256xf32>
    %c0_3 = arith.constant 0 : index
    %c0_4 = arith.constant 0 : index
    %3 = vector.load %arg6[%c0_3, %c0_4] : memref<9x256xf32, #tpu.memory_space<vmem>>, vector<1x256xf32>
    %4 = vector.broadcast %3 : vector<1x256xf32> to vector<4x256xf32>
    %5 = arith.mulf %2, %4 : vector<4x256xf32>
    %c16_i32 = arith.constant 16 : i32
    %6 = tpu.dynamic_rotate %1 by %c16_i32 dim 1 : vector<4x256xf32>, i32 -> vector<4x256xf32>
    %c1 = arith.constant 1 : index
    %c0_5 = arith.constant 0 : index
    %7 = vector.load %arg6[%c1, %c0_5] : memref<9x256xf32, #tpu.memory_space<vmem>>, vector<1x256xf32>
    %8 = vector.broadcast %7 : vector<1x256xf32> to vector<4x256xf32>
    %9 = arith.mulf %6, %8 : vector<4x256xf32>
    %c15_i32 = arith.constant 15 : i32
    %10 = tpu.dynamic_rotate %1 by %c15_i32 dim 1 : vector<4x256xf32>, i32 -> vector<4x256xf32>
    %c2 = arith.constant 2 : index
    %c0_6 = arith.constant 0 : index
    %11 = vector.load %arg6[%c2, %c0_6] : memref<9x256xf32, #tpu.memory_space<vmem>>, vector<1x256xf32>
    %12 = vector.broadcast %11 : vector<1x256xf32> to vector<4x256xf32>
    %13 = arith.mulf %10, %12 : vector<4x256xf32>
    %c1_i32 = arith.constant 1 : i32
    %14 = tpu.dynamic_rotate %1 by %c1_i32 dim 1 : vector<4x256xf32>, i32 -> vector<4x256xf32>
    %c3 = arith.constant 3 : index
    %c0_7 = arith.constant 0 : index
    %15 = vector.load %arg6[%c3, %c0_7] : memref<9x256xf32, #tpu.memory_space<vmem>>, vector<1x256xf32>
    %16 = vector.broadcast %15 : vector<1x256xf32> to vector<4x256xf32>
    %17 = arith.mulf %14, %16 : vector<4x256xf32>
    %c255_i32 = arith.constant 255 : i32
    %18 = tpu.dynamic_rotate %1 by %c255_i32 dim 1 : vector<4x256xf32>, i32 -> vector<4x256xf32>
    %c5 = arith.constant 5 : index
    %c0_8 = arith.constant 0 : index
    %19 = vector.load %arg6[%c5, %c0_8] : memref<9x256xf32, #tpu.memory_space<vmem>>, vector<1x256xf32>
    %20 = vector.broadcast %19 : vector<1x256xf32> to vector<4x256xf32>
    %21 = arith.mulf %18, %20 : vector<4x256xf32>
    %c241_i32 = arith.constant 241 : i32
    %22 = tpu.dynamic_rotate %1 by %c241_i32 dim 1 : vector<4x256xf32>, i32 -> vector<4x256xf32>
    %c6 = arith.constant 6 : index
    %c0_9 = arith.constant 0 : index
    %23 = vector.load %arg6[%c6, %c0_9] : memref<9x256xf32, #tpu.memory_space<vmem>>, vector<1x256xf32>
    %24 = vector.broadcast %23 : vector<1x256xf32> to vector<4x256xf32>
    %25 = arith.mulf %22, %24 : vector<4x256xf32>
    %c240_i32 = arith.constant 240 : i32
    %26 = tpu.dynamic_rotate %1 by %c240_i32 dim 1 : vector<4x256xf32>, i32 -> vector<4x256xf32>
    %c7 = arith.constant 7 : index
    %c0_10 = arith.constant 0 : index
    %27 = vector.load %arg6[%c7, %c0_10] : memref<9x256xf32, #tpu.memory_space<vmem>>, vector<1x256xf32>
    %28 = vector.broadcast %27 : vector<1x256xf32> to vector<4x256xf32>
    %29 = arith.mulf %26, %28 : vector<4x256xf32>
    %c239_i32 = arith.constant 239 : i32
    %30 = tpu.dynamic_rotate %1 by %c239_i32 dim 1 : vector<4x256xf32>, i32 -> vector<4x256xf32>
    %c8 = arith.constant 8 : index
    %c0_11 = arith.constant 0 : index
    %31 = vector.load %arg6[%c8, %c0_11] : memref<9x256xf32, #tpu.memory_space<vmem>>, vector<1x256xf32>
    %32 = vector.broadcast %31 : vector<1x256xf32> to vector<4x256xf32>
    %33 = arith.mulf %30, %32 : vector<4x256xf32>
    %34 = tpu.concatenate %5, %9, %13, %17, %1, %21, %25, %29, %33 in 0 : vector<4x256xf32>, vector<4x256xf32>, vector<4x256xf32>, vector<4x256xf32>, vector<4x256xf32>, vector<4x256xf32>, vector<4x256xf32>, vector<4x256xf32>, vector<4x256xf32> -> vector<36x256xf32>
    %cst = arith.constant dense<0.000000e+00> : vector<8x256xf32>
    %35 = tpu.matmul %0, %34, %cst {dimension_numbers = #tpu.dot_dimension_numbers<[1], [0], [0], [1], [0, 0, 1, 1], [], []>} : vector<8x36xf32>, vector<36x256xf32>, vector<8x256xf32> -> vector<8x256xf32>
    %c0_12 = arith.constant 0 : index
    %c0_13 = arith.constant 0 : index
    %36 = vector.load %arg3[%c0_12, %c0_13] : memref<8x1xf32, #tpu.memory_space<vmem>>, vector<8x1xf32>
    %37 = vector.broadcast %36 : vector<8x1xf32> to vector<8x256xf32>
    %38 = arith.addf %35, %37 : vector<8x256xf32>
    %cst_14 = arith.constant 0.000000e+00 : f32
    %39 = vector.broadcast %cst_14 : f32 to vector<8x256xf32>
    %40 = arith.maximumf %38, %39 : vector<8x256xf32>
    %c255_i32_15 = arith.constant 255 : i32
    %41 = tpu.dynamic_rotate %40 by %c255_i32_15 dim 1 : vector<8x256xf32>, i32 -> vector<8x256xf32>
    %42 = arith.maximumf %40, %41 : vector<8x256xf32>
    %c240_i32_16 = arith.constant 240 : i32
    %43 = tpu.dynamic_rotate %40 by %c240_i32_16 dim 1 : vector<8x256xf32>, i32 -> vector<8x256xf32>
    %c239_i32_17 = arith.constant 239 : i32
    %44 = tpu.dynamic_rotate %40 by %c239_i32_17 dim 1 : vector<8x256xf32>, i32 -> vector<8x256xf32>
    %45 = arith.maximumf %43, %44 : vector<8x256xf32>
    %46 = arith.maximumf %42, %45 : vector<8x256xf32>
    %c0_18 = arith.constant 0 : index
    %c0_19 = arith.constant 0 : index
    %47 = vector.load %arg4[%c0_18, %c0_19] : memref<16x72xf32, #tpu.memory_space<vmem>>, vector<16x72xf32>
    %c34_i32 = arith.constant 34 : i32
    %48 = tpu.dynamic_rotate %46 by %c34_i32 dim 1 : vector<8x256xf32>, i32 -> vector<8x256xf32>
    %c0_20 = arith.constant 0 : index
    %c0_21 = arith.constant 0 : index
    %49 = vector.load %arg7[%c0_20, %c0_21] : memref<9x256xf32, #tpu.memory_space<vmem>>, vector<1x256xf32>
    %50 = vector.broadcast %49 : vector<1x256xf32> to vector<8x256xf32>
    %51 = arith.mulf %48, %50 : vector<8x256xf32>
    %c32_i32 = arith.constant 32 : i32
    %52 = tpu.dynamic_rotate %46 by %c32_i32 dim 1 : vector<8x256xf32>, i32 -> vector<8x256xf32>
    %c1_22 = arith.constant 1 : index
    %c0_23 = arith.constant 0 : index
    %53 = vector.load %arg7[%c1_22, %c0_23] : memref<9x256xf32, #tpu.memory_space<vmem>>, vector<1x256xf32>
    %54 = vector.broadcast %53 : vector<1x256xf32> to vector<8x256xf32>
    %55 = arith.mulf %52, %54 : vector<8x256xf32>
    %c30_i32 = arith.constant 30 : i32
    %56 = tpu.dynamic_rotate %46 by %c30_i32 dim 1 : vector<8x256xf32>, i32 -> vector<8x256xf32>
    %c2_24 = arith.constant 2 : index
    %c0_25 = arith.constant 0 : index
    %57 = vector.load %arg7[%c2_24, %c0_25] : memref<9x256xf32, #tpu.memory_space<vmem>>, vector<1x256xf32>
    %58 = vector.broadcast %57 : vector<1x256xf32> to vector<8x256xf32>
    %59 = arith.mulf %56, %58 : vector<8x256xf32>
    %c2_i32 = arith.constant 2 : i32
    %60 = tpu.dynamic_rotate %46 by %c2_i32 dim 1 : vector<8x256xf32>, i32 -> vector<8x256xf32>
    %c3_26 = arith.constant 3 : index
    %c0_27 = arith.constant 0 : index
    %61 = vector.load %arg7[%c3_26, %c0_27] : memref<9x256xf32, #tpu.memory_space<vmem>>, vector<1x256xf32>
    %62 = vector.broadcast %61 : vector<1x256xf32> to vector<8x256xf32>
    %63 = arith.mulf %60, %62 : vector<8x256xf32>
    %c254_i32 = arith.constant 254 : i32
    %64 = tpu.dynamic_rotate %46 by %c254_i32 dim 1 : vector<8x256xf32>, i32 -> vector<8x256xf32>
    %c5_28 = arith.constant 5 : index
    %c0_29 = arith.constant 0 : index
    %65 = vector.load %arg7[%c5_28, %c0_29] : memref<9x256xf32, #tpu.memory_space<vmem>>, vector<1x256xf32>
    %66 = vector.broadcast %65 : vector<1x256xf32> to vector<8x256xf32>
    %67 = arith.mulf %64, %66 : vector<8x256xf32>
    %c226_i32 = arith.constant 226 : i32
    %68 = tpu.dynamic_rotate %46 by %c226_i32 dim 1 : vector<8x256xf32>, i32 -> vector<8x256xf32>
    %c6_30 = arith.constant 6 : index
    %c0_31 = arith.constant 0 : index
    %69 = vector.load %arg7[%c6_30, %c0_31] : memref<9x256xf32, #tpu.memory_space<vmem>>, vector<1x256xf32>
    %70 = vector.broadcast %69 : vector<1x256xf32> to vector<8x256xf32>
    %71 = arith.mulf %68, %70 : vector<8x256xf32>
    %c224_i32 = arith.constant 224 : i32
    %72 = tpu.dynamic_rotate %46 by %c224_i32 dim 1 : vector<8x256xf32>, i32 -> vector<8x256xf32>
    %c7_32 = arith.constant 7 : index
    %c0_33 = arith.constant 0 : index
    %73 = vector.load %arg7[%c7_32, %c0_33] : memref<9x256xf32, #tpu.memory_space<vmem>>, vector<1x256xf32>
    %74 = vector.broadcast %73 : vector<1x256xf32> to vector<8x256xf32>
    %75 = arith.mulf %72, %74 : vector<8x256xf32>
    %c222_i32 = arith.constant 222 : i32
    %76 = tpu.dynamic_rotate %46 by %c222_i32 dim 1 : vector<8x256xf32>, i32 -> vector<8x256xf32>
    %c8_34 = arith.constant 8 : index
    %c0_35 = arith.constant 0 : index
    %77 = vector.load %arg7[%c8_34, %c0_35] : memref<9x256xf32, #tpu.memory_space<vmem>>, vector<1x256xf32>
    %78 = vector.broadcast %77 : vector<1x256xf32> to vector<8x256xf32>
    %79 = arith.mulf %76, %78 : vector<8x256xf32>
    %80 = tpu.concatenate %51, %55, %59, %63, %46, %67, %71, %75, %79 in 0 : vector<8x256xf32>, vector<8x256xf32>, vector<8x256xf32>, vector<8x256xf32>, vector<8x256xf32>, vector<8x256xf32>, vector<8x256xf32>, vector<8x256xf32>, vector<8x256xf32> -> vector<72x256xf32>
    %cst_36 = arith.constant dense<0.000000e+00> : vector<16x256xf32>
    %81 = tpu.matmul %47, %80, %cst_36 {dimension_numbers = #tpu.dot_dimension_numbers<[1], [0], [0], [1], [0, 0, 1, 1], [], []>} : vector<16x72xf32>, vector<72x256xf32>, vector<16x256xf32> -> vector<16x256xf32>
    %c0_37 = arith.constant 0 : index
    %c0_38 = arith.constant 0 : index
    %82 = vector.load %arg5[%c0_37, %c0_38] : memref<16x1xf32, #tpu.memory_space<vmem>>, vector<16x1xf32>
    %83 = vector.broadcast %82 : vector<16x1xf32> to vector<16x256xf32>
    %84 = arith.addf %81, %83 : vector<16x256xf32>
    %cst_39 = arith.constant 0.000000e+00 : f32
    %85 = vector.broadcast %cst_39 : f32 to vector<16x256xf32>
    %86 = arith.maximumf %84, %85 : vector<16x256xf32>
    %c254_i32_40 = arith.constant 254 : i32
    %87 = tpu.dynamic_rotate %86 by %c254_i32_40 dim 1 : vector<16x256xf32>, i32 -> vector<16x256xf32>
    %88 = arith.maximumf %86, %87 : vector<16x256xf32>
    %c224_i32_41 = arith.constant 224 : i32
    %89 = tpu.dynamic_rotate %86 by %c224_i32_41 dim 1 : vector<16x256xf32>, i32 -> vector<16x256xf32>
    %c222_i32_42 = arith.constant 222 : i32
    %90 = tpu.dynamic_rotate %86 by %c222_i32_42 dim 1 : vector<16x256xf32>, i32 -> vector<16x256xf32>
    %91 = arith.maximumf %89, %90 : vector<16x256xf32>
    %92 = arith.maximumf %88, %91 : vector<16x256xf32>
    %c0_43 = arith.constant 0 : index
    %c0_44 = arith.constant 0 : index
    %c0_45 = arith.constant 0 : index
    %93 = vector.load %arg8[%c0_43, %c0_44, %c0_45] : memref<16x8x256xf32, #tpu.memory_space<vmem>>, vector<1x8x256xf32>
    %94 = vector.shape_cast %93 : vector<1x8x256xf32> to vector<8x256xf32>
    %95 = vector.extract_strided_slice %92 {offsets = [0, 0], sizes = [1, 256], strides = [1, 1]} : vector<16x256xf32> to vector<1x256xf32>
    %96 = vector.broadcast %95 : vector<1x256xf32> to vector<8x256xf32>
    %97 = arith.mulf %94, %96 : vector<8x256xf32>
    %c1_46 = arith.constant 1 : index
    %c0_47 = arith.constant 0 : index
    %c0_48 = arith.constant 0 : index
    %98 = vector.load %arg8[%c1_46, %c0_47, %c0_48] : memref<16x8x256xf32, #tpu.memory_space<vmem>>, vector<1x8x256xf32>
    %99 = vector.shape_cast %98 : vector<1x8x256xf32> to vector<8x256xf32>
    %100 = vector.extract_strided_slice %92 {offsets = [1, 0], sizes = [1, 256], strides = [1, 1]} : vector<16x256xf32> to vector<1x256xf32>
    %101 = vector.broadcast %100 : vector<1x256xf32> to vector<8x256xf32>
    %102 = arith.mulf %99, %101 : vector<8x256xf32>
    %103 = arith.addf %97, %102 : vector<8x256xf32>
    %c2_49 = arith.constant 2 : index
    %c0_50 = arith.constant 0 : index
    %c0_51 = arith.constant 0 : index
    %104 = vector.load %arg8[%c2_49, %c0_50, %c0_51] : memref<16x8x256xf32, #tpu.memory_space<vmem>>, vector<1x8x256xf32>
    %105 = vector.shape_cast %104 : vector<1x8x256xf32> to vector<8x256xf32>
    %106 = vector.extract_strided_slice %92 {offsets = [2, 0], sizes = [1, 256], strides = [1, 1]} : vector<16x256xf32> to vector<1x256xf32>
    %107 = vector.broadcast %106 : vector<1x256xf32> to vector<8x256xf32>
    %108 = arith.mulf %105, %107 : vector<8x256xf32>
    %109 = arith.addf %103, %108 : vector<8x256xf32>
    %c3_52 = arith.constant 3 : index
    %c0_53 = arith.constant 0 : index
    %c0_54 = arith.constant 0 : index
    %110 = vector.load %arg8[%c3_52, %c0_53, %c0_54] : memref<16x8x256xf32, #tpu.memory_space<vmem>>, vector<1x8x256xf32>
    %111 = vector.shape_cast %110 : vector<1x8x256xf32> to vector<8x256xf32>
    %112 = vector.extract_strided_slice %92 {offsets = [3, 0], sizes = [1, 256], strides = [1, 1]} : vector<16x256xf32> to vector<1x256xf32>
    %113 = vector.broadcast %112 : vector<1x256xf32> to vector<8x256xf32>
    %114 = arith.mulf %111, %113 : vector<8x256xf32>
    %115 = arith.addf %109, %114 : vector<8x256xf32>
    %c4 = arith.constant 4 : index
    %c0_55 = arith.constant 0 : index
    %c0_56 = arith.constant 0 : index
    %116 = vector.load %arg8[%c4, %c0_55, %c0_56] : memref<16x8x256xf32, #tpu.memory_space<vmem>>, vector<1x8x256xf32>
    %117 = vector.shape_cast %116 : vector<1x8x256xf32> to vector<8x256xf32>
    %118 = vector.extract_strided_slice %92 {offsets = [4, 0], sizes = [1, 256], strides = [1, 1]} : vector<16x256xf32> to vector<1x256xf32>
    %119 = vector.broadcast %118 : vector<1x256xf32> to vector<8x256xf32>
    %120 = arith.mulf %117, %119 : vector<8x256xf32>
    %121 = arith.addf %115, %120 : vector<8x256xf32>
    %c5_57 = arith.constant 5 : index
    %c0_58 = arith.constant 0 : index
    %c0_59 = arith.constant 0 : index
    %122 = vector.load %arg8[%c5_57, %c0_58, %c0_59] : memref<16x8x256xf32, #tpu.memory_space<vmem>>, vector<1x8x256xf32>
    %123 = vector.shape_cast %122 : vector<1x8x256xf32> to vector<8x256xf32>
    %124 = vector.extract_strided_slice %92 {offsets = [5, 0], sizes = [1, 256], strides = [1, 1]} : vector<16x256xf32> to vector<1x256xf32>
    %125 = vector.broadcast %124 : vector<1x256xf32> to vector<8x256xf32>
    %126 = arith.mulf %123, %125 : vector<8x256xf32>
    %127 = arith.addf %121, %126 : vector<8x256xf32>
    %c6_60 = arith.constant 6 : index
    %c0_61 = arith.constant 0 : index
    %c0_62 = arith.constant 0 : index
    %128 = vector.load %arg8[%c6_60, %c0_61, %c0_62] : memref<16x8x256xf32, #tpu.memory_space<vmem>>, vector<1x8x256xf32>
    %129 = vector.shape_cast %128 : vector<1x8x256xf32> to vector<8x256xf32>
    %130 = vector.extract_strided_slice %92 {offsets = [6, 0], sizes = [1, 256], strides = [1, 1]} : vector<16x256xf32> to vector<1x256xf32>
    %131 = vector.broadcast %130 : vector<1x256xf32> to vector<8x256xf32>
    %132 = arith.mulf %129, %131 : vector<8x256xf32>
    %133 = arith.addf %127, %132 : vector<8x256xf32>
    %c7_63 = arith.constant 7 : index
    %c0_64 = arith.constant 0 : index
    %c0_65 = arith.constant 0 : index
    %134 = vector.load %arg8[%c7_63, %c0_64, %c0_65] : memref<16x8x256xf32, #tpu.memory_space<vmem>>, vector<1x8x256xf32>
    %135 = vector.shape_cast %134 : vector<1x8x256xf32> to vector<8x256xf32>
    %136 = vector.extract_strided_slice %92 {offsets = [7, 0], sizes = [1, 256], strides = [1, 1]} : vector<16x256xf32> to vector<1x256xf32>
    %137 = vector.broadcast %136 : vector<1x256xf32> to vector<8x256xf32>
    %138 = arith.mulf %135, %137 : vector<8x256xf32>
    %139 = arith.addf %133, %138 : vector<8x256xf32>
    %c8_66 = arith.constant 8 : index
    %c0_67 = arith.constant 0 : index
    %c0_68 = arith.constant 0 : index
    %140 = vector.load %arg8[%c8_66, %c0_67, %c0_68] : memref<16x8x256xf32, #tpu.memory_space<vmem>>, vector<1x8x256xf32>
    %141 = vector.shape_cast %140 : vector<1x8x256xf32> to vector<8x256xf32>
    %142 = vector.extract_strided_slice %92 {offsets = [8, 0], sizes = [1, 256], strides = [1, 1]} : vector<16x256xf32> to vector<1x256xf32>
    %143 = vector.broadcast %142 : vector<1x256xf32> to vector<8x256xf32>
    %144 = arith.mulf %141, %143 : vector<8x256xf32>
    %145 = arith.addf %139, %144 : vector<8x256xf32>
    %c9 = arith.constant 9 : index
    %c0_69 = arith.constant 0 : index
    %c0_70 = arith.constant 0 : index
    %146 = vector.load %arg8[%c9, %c0_69, %c0_70] : memref<16x8x256xf32, #tpu.memory_space<vmem>>, vector<1x8x256xf32>
    %147 = vector.shape_cast %146 : vector<1x8x256xf32> to vector<8x256xf32>
    %148 = vector.extract_strided_slice %92 {offsets = [9, 0], sizes = [1, 256], strides = [1, 1]} : vector<16x256xf32> to vector<1x256xf32>
    %149 = vector.broadcast %148 : vector<1x256xf32> to vector<8x256xf32>
    %150 = arith.mulf %147, %149 : vector<8x256xf32>
    %151 = arith.addf %145, %150 : vector<8x256xf32>
    %c10 = arith.constant 10 : index
    %c0_71 = arith.constant 0 : index
    %c0_72 = arith.constant 0 : index
    %152 = vector.load %arg8[%c10, %c0_71, %c0_72] : memref<16x8x256xf32, #tpu.memory_space<vmem>>, vector<1x8x256xf32>
    %153 = vector.shape_cast %152 : vector<1x8x256xf32> to vector<8x256xf32>
    %154 = vector.extract_strided_slice %92 {offsets = [10, 0], sizes = [1, 256], strides = [1, 1]} : vector<16x256xf32> to vector<1x256xf32>
    %155 = vector.broadcast %154 : vector<1x256xf32> to vector<8x256xf32>
    %156 = arith.mulf %153, %155 : vector<8x256xf32>
    %157 = arith.addf %151, %156 : vector<8x256xf32>
    %c11 = arith.constant 11 : index
    %c0_73 = arith.constant 0 : index
    %c0_74 = arith.constant 0 : index
    %158 = vector.load %arg8[%c11, %c0_73, %c0_74] : memref<16x8x256xf32, #tpu.memory_space<vmem>>, vector<1x8x256xf32>
    %159 = vector.shape_cast %158 : vector<1x8x256xf32> to vector<8x256xf32>
    %160 = vector.extract_strided_slice %92 {offsets = [11, 0], sizes = [1, 256], strides = [1, 1]} : vector<16x256xf32> to vector<1x256xf32>
    %161 = vector.broadcast %160 : vector<1x256xf32> to vector<8x256xf32>
    %162 = arith.mulf %159, %161 : vector<8x256xf32>
    %163 = arith.addf %157, %162 : vector<8x256xf32>
    %c12 = arith.constant 12 : index
    %c0_75 = arith.constant 0 : index
    %c0_76 = arith.constant 0 : index
    %164 = vector.load %arg8[%c12, %c0_75, %c0_76] : memref<16x8x256xf32, #tpu.memory_space<vmem>>, vector<1x8x256xf32>
    %165 = vector.shape_cast %164 : vector<1x8x256xf32> to vector<8x256xf32>
    %166 = vector.extract_strided_slice %92 {offsets = [12, 0], sizes = [1, 256], strides = [1, 1]} : vector<16x256xf32> to vector<1x256xf32>
    %167 = vector.broadcast %166 : vector<1x256xf32> to vector<8x256xf32>
    %168 = arith.mulf %165, %167 : vector<8x256xf32>
    %169 = arith.addf %163, %168 : vector<8x256xf32>
    %c13 = arith.constant 13 : index
    %c0_77 = arith.constant 0 : index
    %c0_78 = arith.constant 0 : index
    %170 = vector.load %arg8[%c13, %c0_77, %c0_78] : memref<16x8x256xf32, #tpu.memory_space<vmem>>, vector<1x8x256xf32>
    %171 = vector.shape_cast %170 : vector<1x8x256xf32> to vector<8x256xf32>
    %172 = vector.extract_strided_slice %92 {offsets = [13, 0], sizes = [1, 256], strides = [1, 1]} : vector<16x256xf32> to vector<1x256xf32>
    %173 = vector.broadcast %172 : vector<1x256xf32> to vector<8x256xf32>
    %174 = arith.mulf %171, %173 : vector<8x256xf32>
    %175 = arith.addf %169, %174 : vector<8x256xf32>
    %c14 = arith.constant 14 : index
    %c0_79 = arith.constant 0 : index
    %c0_80 = arith.constant 0 : index
    %176 = vector.load %arg8[%c14, %c0_79, %c0_80] : memref<16x8x256xf32, #tpu.memory_space<vmem>>, vector<1x8x256xf32>
    %177 = vector.shape_cast %176 : vector<1x8x256xf32> to vector<8x256xf32>
    %178 = vector.extract_strided_slice %92 {offsets = [14, 0], sizes = [1, 256], strides = [1, 1]} : vector<16x256xf32> to vector<1x256xf32>
    %179 = vector.broadcast %178 : vector<1x256xf32> to vector<8x256xf32>
    %180 = arith.mulf %177, %179 : vector<8x256xf32>
    %181 = arith.addf %175, %180 : vector<8x256xf32>
    %c15 = arith.constant 15 : index
    %c0_81 = arith.constant 0 : index
    %c0_82 = arith.constant 0 : index
    %182 = vector.load %arg8[%c15, %c0_81, %c0_82] : memref<16x8x256xf32, #tpu.memory_space<vmem>>, vector<1x8x256xf32>
    %183 = vector.shape_cast %182 : vector<1x8x256xf32> to vector<8x256xf32>
    %184 = vector.extract_strided_slice %92 {offsets = [15, 0], sizes = [1, 256], strides = [1, 1]} : vector<16x256xf32> to vector<1x256xf32>
    %185 = vector.broadcast %184 : vector<1x256xf32> to vector<8x256xf32>
    %186 = arith.mulf %183, %185 : vector<8x256xf32>
    %187 = arith.addf %181, %186 : vector<8x256xf32>
    %c0_83 = arith.constant 0 : index
    %c0_84 = arith.constant 0 : index
    %188 = vector.load %arg9[%c0_83, %c0_84] : memref<256x128xf32, #tpu.memory_space<vmem>>, vector<256x128xf32>
    %cst_85 = arith.constant dense<0.000000e+00> : vector<8x128xf32>
    %189 = tpu.matmul %187, %188, %cst_85 {dimension_numbers = #tpu.dot_dimension_numbers<[1], [0], [0], [1], [0, 0, 1, 1], [], []>} : vector<8x256xf32>, vector<256x128xf32>, vector<8x128xf32> -> vector<8x128xf32>
    %c0_86 = arith.constant 0 : index
    %c0_87 = arith.constant 0 : index
    %190 = vector.load %arg10[%c0_86, %c0_87] : memref<8x1xf32, #tpu.memory_space<vmem>>, vector<8x1xf32>
    %191 = vector.broadcast %190 : vector<8x1xf32> to vector<8x128xf32>
    %192 = arith.addf %189, %191 : vector<8x128xf32>
    %c0_88 = arith.constant 0 : index
    %c0_89 = arith.constant 0 : index
    %c0_90 = arith.constant 0 : index
    %193 = vector.load %arg11[%c0_88, %c0_89, %c0_90] : memref<1x8x128xf32, #tpu.memory_space<vmem>>, vector<1x8x128xf32>
    %194 = vector.shape_cast %193 : vector<1x8x128xf32> to vector<8x128xf32>
    %195 = vector.shape_cast %192 : vector<8x128xf32> to vector<1x8x128xf32>
    tpu.vector_store %arg11[%c0_88, %c0_89, %c0_90], %195 {strides = array<i32>} : memref<1x8x128xf32, #tpu.memory_space<vmem>>, vector<1x8x128xf32>,
    return
  }
  func.func @transform_0(%arg0: i32) -> (i32, i32) {
    %c0_i32 = arith.constant 0 : i32
    %c0_i32_0 = arith.constant 0 : i32
    return %c0_i32, %arg0 : i32, i32
  }
  func.func @transform_1(%arg0: i32) -> (i32, i32) {
    %c0_i32 = arith.constant 0 : i32
    %c0_i32_0 = arith.constant 0 : i32
    %c0_i32_1 = arith.constant 0 : i32
    return %c0_i32, %c0_i32_0 : i32, i32
  }
  func.func @transform_2(%arg0: i32) -> (i32, i32) {
    %c0_i32 = arith.constant 0 : i32
    %c0_i32_0 = arith.constant 0 : i32
    %c0_i32_1 = arith.constant 0 : i32
    return %c0_i32, %c0_i32_0 : i32, i32
  }
  func.func @transform_3(%arg0: i32) -> (i32, i32) {
    %c0_i32 = arith.constant 0 : i32
    %c0_i32_0 = arith.constant 0 : i32
    %c0_i32_1 = arith.constant 0 : i32
    return %c0_i32, %c0_i32_0 : i32, i32
  }
  func.func @transform_4(%arg0: i32) -> (i32, i32) {
    %c0_i32 = arith.constant 0 : i32
    %c0_i32_0 = arith.constant 0 : i32
    %c0_i32_1 = arith.constant 0 : i32
    return %c0_i32, %c0_i32_0 : i32, i32
  }
  func.func @transform_5(%arg0: i32) -> (i32, i32) {
    %c0_i32 = arith.constant 0 : i32
    %c0_i32_0 = arith.constant 0 : i32
    %c0_i32_1 = arith.constant 0 : i32
    return %c0_i32, %c0_i32_0 : i32, i32
  }
  func.func @transform_6(%arg0: i32) -> (i32, i32) {
    %c0_i32 = arith.constant 0 : i32
    %c0_i32_0 = arith.constant 0 : i32
    %c0_i32_1 = arith.constant 0 : i32
    return %c0_i32, %c0_i32_0 : i32, i32
  }
  func.func @transform_7(%arg0: i32) -> (i32, i32, i32) {
    %c0_i32 = arith.constant 0 : i32
    %c0_i32_0 = arith.constant 0 : i32
    %c0_i32_1 = arith.constant 0 : i32
    %c0_i32_2 = arith.constant 0 : i32
    return %c0_i32, %c0_i32_0, %c0_i32_1 : i32, i32, i32
  }
  func.func @transform_8(%arg0: i32) -> (i32, i32) {
    %c0_i32 = arith.constant 0 : i32
    %c0_i32_0 = arith.constant 0 : i32
    %c0_i32_1 = arith.constant 0 : i32
    return %c0_i32, %c0_i32_0 : i32, i32
  }
  func.func @transform_9(%arg0: i32) -> (i32, i32) {
    %c0_i32 = arith.constant 0 : i32
    %c0_i32_0 = arith.constant 0 : i32
    %c0_i32_1 = arith.constant 0 : i32
    return %c0_i32, %c0_i32_0 : i32, i32
  }
  func.func @transform_10(%arg0: i32) -> (i32, i32, i32) {
    %c0_i32 = arith.constant 0 : i32
    %c0_i32_0 = arith.constant 0 : i32
    %c0_i32_1 = arith.constant 0 : i32
    return %arg0, %c0_i32, %c0_i32_0 : i32, i32, i32
  }
}

</mosaic_0001>

<llo_original>
// kernel: hand_gesture_cnn_forward.1
$region0: #{hand_gesture_cnn_forward.1}
  #allocation0 [shape = 'u32[]', space=smem, size = 0x4, offset = 0x4, fixed_abs, tag = 'smem constant byte address 0x4 - core index']
  #allocation1 [shape = 'u32[144,128]{1,0:T(1,128)}', space=vmem, size = 0x12000, scoped, tag = 'internal scratch']
  %s0 = inlined_call_operand.vmem [shape: f32[4,512], index: 0, kind: input, shape index: {}]
  %s1 = inlined_call_operand.vmem [shape: f32[8,36], index: 1, kind: input, shape index: {}]
  %s2 = inlined_call_operand.vmem [shape: f32[8,1], index: 2, kind: input, shape index: {}]
  %s3 = inlined_call_operand.vmem [shape: f32[16,72], index: 3, kind: input, shape index: {}]
  %s4 = inlined_call_operand.vmem [shape: f32[16,1], index: 4, kind: input, shape index: {}]
  %s5 = inlined_call_operand.vmem [shape: f32[9,256], index: 5, kind: input, shape index: {}]
  %s6 = inlined_call_operand.vmem [shape: f32[9,256], index: 6, kind: input, shape index: {}]
  %s7 = inlined_call_operand.vmem [shape: f32[16,8,256], index: 7, kind: input, shape index: {}]
  %s8 = inlined_call_operand.vmem [shape: f32[256,128], index: 8, kind: input, shape index: {}]
  %s9 = inlined_call_operand.vmem [shape: f32[8,1], index: 9, kind: input, shape index: {}]
  %s10 = inlined_call_operand.vmem [shape: f32[2,8,128], index: 10, kind: output, shape index: {}]
  %s11 = sld [smem:[#allocation0]]
  $region73: #{hand_gesture_cnn_forward.1} parent=0
    _
  %s13 = ssub.s32 1, %s11
  %s14 = scalar_select 0, %s13, %s11
  loop: start=0, step=1, limit=4
  $region2: #{hand_gesture_cnn_forward.1} parent=0 // loop_pre_header
    _
  $region3: #{hand_gesture_cnn_forward.1} parent=0 // loop_header
    %s16 = sphi 0, %s20
    %p17 = scmp.ge.s32.totalorder %s16, 4
    %s26 = sphi 0, %s28
    %s29 = sphi 0, %s26
    %s30 = sphi 0, %s29
    %s46 = sphi 0, %s30
    %s50 = sphi 0, %s50
    %s52 = sphi 0, %s50
    %s53 = sphi 0, %s52
    %s67 = sphi 0, %s53
    %s71 = sphi 0, %s71
    %s73 = sphi 0, %s71
    %s74 = sphi 0, %s73
    %s88 = sphi 0, %s74
    %s92 = sphi 0, %s92
    %s94 = sphi 0, %s92
    %s95 = sphi 0, %s94
    %s109 = sphi 0, %s95
    %s113 = sphi 0, %s113
    %s115 = sphi 0, %s113
    %s116 = sphi 0, %s115
    %s130 = sphi 0, %s116
    %s134 = sphi 0, %s134
    %s136 = sphi 0, %s134
    %s137 = sphi 0, %s136
    %s151 = sphi 0, %s137
    %s155 = sphi 0, %s155
    %s157 = sphi 0, %s155
    %s158 = sphi 0, %s157
    %s172 = sphi 0, %s158
    %s176 = sphi 0, %s176
    %s178 = sphi 0, %s176
    %s179 = sphi 0, %s178
    %s193 = sphi 0, %s179
    %s197 = sphi 0, %s197
    %s199 = sphi 0, %s197
    %s200 = sphi 0, %s199
    %s214 = sphi 0, %s200
    %s218 = sphi 0, %s218
    %s220 = sphi 0, %s218
    %s221 = sphi 0, %s220
    %s235 = sphi 0, %s221
    %s241 = sphi 0, %s243
    %s244 = sphi 0, %s241
    %s245 = sphi 0, %s244
    %s261 = sphi 0, %s245
  $region4: #{hand_gesture_cnn_forward.1} parent=0 // loop_header_branch
    %19 = sbr.rel (%p17) target = $region8
  $region5: #{hand_gesture_cnn_forward.1} parent=0 // loop_body
    %s21 = ssub.s32 %s16, 1
    %s22 = ssub.s32 %s16, 2
    %s23 = sadd.s32 %s16, 1
    %s24 = ssub.s32 %s16, %s23
    %p25 = scmp.eq.s32.totalorder %s24, 0
    %s27 = sadd.s32 %s26, 1
    %s28 = scalar_select %p25, %s26, %s27
    %p31 = pneg %p25
    %p32 = scmp.eq.s32.totalorder %s16, 1
    %p33 = por %p31, %p32
    %p34 = scmp.ne.s32.totalorder %s26, %s29
    %p35 = scmp.eq.s32.totalorder %s16, 0
    %p36 = por %p34, %p35
    %p37 = scmp.ne.s32.totalorder %s26, %s29
    %p38 = scmp.eq.s32.totalorder %s21, 1
    %p39 = por %p37, %p38
    %p40 = scmp.ne.s32.totalorder %s29, %s30
    %p41 = scmp.eq.s32.totalorder %s21, 0
    %p42 = por %p40, %p41
    %p43 = scmp.ne.s32.totalorder %s29, %s30
    %p44 = scmp.eq.s32.totalorder %s22, 1
    %p45 = por %p43, %p44
    %p47 = scmp.ne.s32.totalorder %s30, %s46
    %p48 = scmp.eq.s32.totalorder %s22, 0
    %p49 = por %p47, %p48
    %s51 = sadd.s32 %s50, 1
    %p54 = scmp.eq.s32.totalorder %s16, 1
    %p55 = scmp.ne.s32.totalorder %s50, %s52
    %p56 = scmp.eq.s32.totalorder %s16, 0
    %p57 = por %p55, %p56
    %p58 = scmp.ne.s32.totalorder %s50, %s52
    %p59 = scmp.eq.s32.totalorder %s21, 1
    %p60 = por %p58, %p59
    %p61 = scmp.ne.s32.totalorder %s52, %s53
    %p62 = scmp.eq.s32.totalorder %s21, 0
    %p63 = por %p61, %p62
    %p64 = scmp.ne.s32.totalorder %s52, %s53
    %p65 = scmp.eq.s32.totalorder %s22, 1
    %p66 = por %p64, %p65
    %p68 = scmp.ne.s32.totalorder %s53, %s67
    %p69 = scmp.eq.s32.totalorder %s22, 0
    %p70 = por %p68, %p69
    %s72 = sadd.s32 %s71, 1
    %p75 = scmp.eq.s32.totalorder %s16, 1
    %p76 = scmp.ne.s32.totalorder %s71, %s73
    %p77 = scmp.eq.s32.totalorder %s16, 0
    %p78 = por %p76, %p77
    %p79 = scmp.ne.s32.totalorder %s71, %s73
    %p80 = scmp.eq.s32.totalorder %s21, 1
    %p81 = por %p79, %p80
    %p82 = scmp.ne.s32.totalorder %s73, %s74
    %p83 = scmp.eq.s32.totalorder %s21, 0
    %p84 = por %p82, %p83
    %p85 = scmp.ne.s32.totalorder %s73, %s74
    %p86 = scmp.eq.s32.totalorder %s22, 1
    %p87 = por %p85, %p86
    %p89 = scmp.ne.s32.totalorder %s74, %s88
    %p90 = scmp.eq.s32.totalorder %s22, 0
    %p91 = por %p89, %p90
    %s93 = sadd.s32 %s92, 1
    %p96 = scmp.eq.s32.totalorder %s16, 1
    %p97 = scmp.ne.s32.totalorder %s92, %s94
    %p98 = scmp.eq.s32.totalorder %s16, 0
    %p99 = por %p97, %p98
    %p100 = scmp.ne.s32.totalorder %s92, %s94
    %p101 = scmp.eq.s32.totalorder %s21, 1
    %p102 = por %p100, %p101
    %p103 = scmp.ne.s32.totalorder %s94, %s95
    %p104 = scmp.eq.s32.totalorder %s21, 0
    %p105 = por %p103, %p104
    %p106 = scmp.ne.s32.totalorder %s94, %s95
    %p107 = scmp.eq.s32.totalorder %s22, 1
    %p108 = por %p106, %p107
    %p110 = scmp.ne.s32.totalorder %s95, %s109
    %p111 = scmp.eq.s32.totalorder %s22, 0
    %p112 = por %p110, %p111
    %s114 = sadd.s32 %s113, 1
    %p117 = scmp.eq.s32.totalorder %s16, 1
    %p118 = scmp.ne.s32.totalorder %s113, %s115
    %p119 = scmp.eq.s32.totalorder %s16, 0
    %p120 = por %p118, %p119
    %p121 = scmp.ne.s32.totalorder %s113, %s115
    %p122 = scmp.eq.s32.totalorder %s21, 1
    %p123 = por %p121, %p122
    %p124 = scmp.ne.s32.totalorder %s115, %s116
    %p125 = scmp.eq.s32.totalorder %s21, 0
    %p126 = por %p124, %p125
    %p127 = scmp.ne.s32.totalorder %s115, %s116
    %p128 = scmp.eq.s32.totalorder %s22, 1
    %p129 = por %p127, %p128
    %p131 = scmp.ne.s32.totalorder %s116, %s130
    %p132 = scmp.eq.s32.totalorder %s22, 0
    %p133 = por %p131, %p132
    %s135 = sadd.s32 %s134, 1
    %p138 = scmp.eq.s32.totalorder %s16, 1
    %p139 = scmp.ne.s32.totalorder %s134, %s136
    %p140 = scmp.eq.s32.totalorder %s16, 0
    %p141 = por %p139, %p140
    %p142 = scmp.ne.s32.totalorder %s134, %s136
    %p143 = scmp.eq.s32.totalorder %s21, 1
    %p144 = por %p142, %p143
    %p145 = scmp.ne.s32.totalorder %s136, %s137
    %p146 = scmp.eq.s32.totalorder %s21, 0
    %p147 = por %p145, %p146
    %p148 = scmp.ne.s32.totalorder %s136, %s137
    %p149 = scmp.eq.s32.totalorder %s22, 1
    %p150 = por %p148, %p149
    %p152 = scmp.ne.s32.totalorder %s137, %s151
    %p153 = scmp.eq.s32.totalorder %s22, 0
    %p154 = por %p152, %p153
    %s156 = sadd.s32 %s155, 1
    %p159 = scmp.eq.s32.totalorder %s16, 1
    %p160 = scmp.ne.s32.totalorder %s155, %s157
    %p161 = scmp.eq.s32.totalorder %s16, 0
    %p162 = por %p160, %p161
    %p163 = scmp.ne.s32.totalorder %s155, %s157
    %p164 = scmp.eq.s32.totalorder %s21, 1
    %p165 = por %p163, %p164
    %p166 = scmp.ne.s32.totalorder %s157, %s158
    %p167 = scmp.eq.s32.totalorder %s21, 0
    %p168 = por %p166, %p167
    %p169 = scmp.ne.s32.totalorder %s157, %s158
    %p170 = scmp.eq.s32.totalorder %s22, 1
    %p171 = por %p169, %p170
    %p173 = scmp.ne.s32.totalorder %s158, %s172
    %p174 = scmp.eq.s32.totalorder %s22, 0
    %p175 = por %p173, %p174
    %s177 = sadd.s32 %s176, 1
    %p180 = scmp.eq.s32.totalorder %s16, 1
    %p181 = scmp.ne.s32.totalorder %s176, %s178
    %p182 = scmp.eq.s32.totalorder %s16, 0
    %p183 = por %p181, %p182
    %p184 = scmp.ne.s32.totalorder %s176, %s178
    %p185 = scmp.eq.s32.totalorder %s21, 1
    %p186 = por %p184, %p185
    %p187 = scmp.ne.s32.totalorder %s178, %s179
    %p188 = scmp.eq.s32.totalorder %s21, 0
    %p189 = por %p187, %p188
    %p190 = scmp.ne.s32.totalorder %s178, %s179
    %p191 = scmp.eq.s32.totalorder %s22, 1
    %p192 = por %p190, %p191
    %p194 = scmp.ne.s32.totalorder %s179, %s193
    %p195 = scmp.eq.s32.totalorder %s22, 0
    %p196 = por %p194, %p195
    %s198 = sadd.s32 %s197, 1
    %p201 = scmp.eq.s32.totalorder %s16, 1
    %p202 = scmp.ne.s32.totalorder %s197, %s199
    %p203 = scmp.eq.s32.totalorder %s16, 0
    %p204 = por %p202, %p203
    %p205 = scmp.ne.s32.totalorder %s197, %s199
    %p206 = scmp.eq.s32.totalorder %s21, 1
    %p207 = por %p205, %p206
    %p208 = scmp.ne.s32.totalorder %s199, %s200
    %p209 = scmp.eq.s32.totalorder %s21, 0
    %p210 = por %p208, %p209
    %p211 = scmp.ne.s32.totalorder %s199, %s200
    %p212 = scmp.eq.s32.totalorder %s22, 1
    %p213 = por %p211, %p212
    %p215 = scmp.ne.s32.totalorder %s200, %s214
    %p216 = scmp.eq.s32.totalorder %s22, 0
    %p217 = por %p215, %p216
    %s219 = sadd.s32 %s218, 1
    %p222 = scmp.eq.s32.totalorder %s16, 1
    %p223 = scmp.ne.s32.totalorder %s218, %s220
    %p224 = scmp.eq.s32.totalorder %s16, 0
    %p225 = por %p223, %p224
    %p226 = scmp.ne.s32.totalorder %s218, %s220
    %p227 = scmp.eq.s32.totalorder %s21, 1
    %p228 = por %p226, %p227
    %p229 = scmp.ne.s32.totalorder %s220, %s221
    %p230 = scmp.eq.s32.totalorder %s21, 0
    %p231 = por %p229, %p230
    %p232 = scmp.ne.s32.totalorder %s220, %s221
    %p233 = scmp.eq.s32.totalorder %s22, 1
    %p234 = por %p232, %p233
    %p236 = scmp.ne.s32.totalorder %s221, %s235
    %p237 = scmp.eq.s32.totalorder %s22, 0
    %p238 = por %p236, %p237
    %s239 = ssub.s32 %s16, %s23
    %p240 = scmp.eq.s32.totalorder %s239, 0
    %s242 = sadd.s32 %s241, 1
    %s243 = scalar_select %p240, %s241, %s242
    %p246 = pneg %p240
    %p247 = scmp.eq.s32.totalorder %s16, 1
    %p248 = por %p246, %p247
    %p249 = scmp.ne.s32.totalorder %s241, %s244
    %p250 = scmp.eq.s32.totalorder %s16, 0
    %p251 = por %p249, %p250
    %p252 = scmp.ne.s32.totalorder %s241, %s244
    %p253 = scmp.eq.s32.totalorder %s21, 1
    %p254 = por %p252, %p253
    %p255 = scmp.ne.s32.totalorder %s244, %s245
    %p256 = scmp.eq.s32.totalorder %s21, 0
    %p257 = por %p255, %p256
    %p258 = scmp.ne.s32.totalorder %s244, %s245
    %p259 = scmp.eq.s32.totalorder %s22, 1
    %p260 = por %p258, %p259
    %p262 = scmp.ne.s32.totalorder %s245, %s261
    %p263 = scmp.eq.s32.totalorder %s22, 0
    %p264 = por %p262, %p263
    %p265 = scmp.le.s32.totalorder 1, %s16
    %p266 = scmp.lt.s32.totalorder %s16, 3
    %p267 = pnand %p265, %p266
    %p268 = pneg %p267
    // Predicated region
    $region9: #{hand_gesture_cnn_forward.1} parent=5 // pred_check
      _
    $region10: #{hand_gesture_cnn_forward.1} parent=5 // pred_check_branch
      %270 = sbr.rel (%p267) target = $region12
    $region11: #{hand_gesture_cnn_forward.1} parent=5 // pred_region
      %s271 = ssub.s32 %s16, 1
      // Predicated region
      $region13: #{hand_gesture_cnn_forward.1} parent=11 // pred_check
        %p272 = pneg %p63
      $region14: #{hand_gesture_cnn_forward.1} parent=11 // pred_check_branch
        %274 = sbr.rel (%p272) target = $region16
      $region15: #{hand_gesture_cnn_forward.1} parent=11 // pred_region
        _
      $region16: #{hand_gesture_cnn_forward.1} parent=11 // pred_fallthru
        _
      // Predicated region
      $region17: #{hand_gesture_cnn_forward.1} parent=11 // pred_check
        %p275 = pneg %p84
      $region18: #{hand_gesture_cnn_forward.1} parent=11 // pred_check_branch
        %277 = sbr.rel (%p275) target = $region20
      $region19: #{hand_gesture_cnn_forward.1} parent=11 // pred_region
        _
      $region20: #{hand_gesture_cnn_forward.1} parent=11 // pred_fallthru
        _
      // Predicated region
      $region21: #{hand_gesture_cnn_forward.1} parent=11 // pred_check
        %p278 = pneg %p105
      $region22: #{hand_gesture_cnn_forward.1} parent=11 // pred_check_branch
        %280 = sbr.rel (%p278) target = $region24
      $region23: #{hand_gesture_cnn_forward.1} parent=11 // pred_region
        _
      $region24: #{hand_gesture_cnn_forward.1} parent=11 // pred_fallthru
        _
      // Predicated region
      $region25: #{hand_gesture_cnn_forward.1} parent=11 // pred_check
        %p281 = pneg %p126
      $region26: #{hand_gesture_cnn_forward.1} parent=11 // pred_check_branch
        %283 = sbr.rel (%p281) target = $region28
      $region27: #{hand_gesture_cnn_forward.1} parent=11 // pred_region
        _
      $region28: #{hand_gesture_cnn_forward.1} parent=11 // pred_fallthru
        _
      // Predicated region
      $region29: #{hand_gesture_cnn_forward.1} parent=11 // pred_check
        %p284 = pneg %p147
      $region30: #{hand_gesture_cnn_forward.1} parent=11 // pred_check_branch
        %286 = sbr.rel (%p284) target = $region32
      $region31: #{hand_gesture_cnn_forward.1} parent=11 // pred_region
        _
      $region32: #{hand_gesture_cnn_forward.1} parent=11 // pred_fallthru
        _
      // Predicated region
      $region33: #{hand_gesture_cnn_forward.1} parent=11 // pred_check
        %p287 = pneg %p168
      $region34: #{hand_gesture_cnn_forward.1} parent=11 // pred_check_branch
        %289 = sbr.rel (%p287) target = $region36
      $region35: #{hand_gesture_cnn_forward.1} parent=11 // pred_region
        _
      $region36: #{hand_gesture_cnn_forward.1} parent=11 // pred_fallthru
        _
      // Predicated region
      $region37: #{hand_gesture_cnn_forward.1} parent=11 // pred_check
        %p290 = pneg %p189
      $region38: #{hand_gesture_cnn_forward.1} parent=11 // pred_check_branch
        %292 = sbr.rel (%p290) target = $region40
      $region39: #{hand_gesture_cnn_forward.1} parent=11 // pred_region
        _
      $region40: #{hand_gesture_cnn_forward.1} parent=11 // pred_fallthru
        _
      // Predicated region
      $region41: #{hand_gesture_cnn_forward.1} parent=11 // pred_check
        %p293 = pneg %p210
      $region42: #{hand_gesture_cnn_forward.1} parent=11 // pred_check_branch
        %295 = sbr.rel (%p293) target = $region44
      $region43: #{hand_gesture_cnn_forward.1} parent=11 // pred_region
        _
      $region44: #{hand_gesture_cnn_forward.1} parent=11 // pred_fallthru
        _
      // Predicated region
      $region45: #{hand_gesture_cnn_forward.1} parent=11 // pred_check
        %p296 = pneg %p231
      $region46: #{hand_gesture_cnn_forward.1} parent=11 // pred_check_branch
        %298 = sbr.rel (%p296) target = $region48
      $region47: #{hand_gesture_cnn_forward.1} parent=11 // pred_region
        _
      $region48: #{hand_gesture_cnn_forward.1} parent=11 // pred_fallthru
        _
    $region12: #{hand_gesture_cnn_forward.1} parent=5 // pred_fallthru
      _
    %p299 = scmp.lt.s32.totalorder %s16, 2
    // Predicated region
    $region49: #{hand_gesture_cnn_forward.1} parent=5 // pred_check
      %p300 = pneg %p299
    $region50: #{hand_gesture_cnn_forward.1} parent=5 // pred_check_branch
      %302 = sbr.rel (%p300) target = $region52
    $region51: #{hand_gesture_cnn_forward.1} parent=5 // pred_region
      // Predicated region
      $region53: #{hand_gesture_cnn_forward.1} parent=51 // pred_check
        %p303 = pneg %p36
      $region54: #{hand_gesture_cnn_forward.1} parent=51 // pred_check_branch
        %305 = sbr.rel (%p303) target = $region56
      $region55: #{hand_gesture_cnn_forward.1} parent=51 // pred_region
        %s306 = smul.u32 2, %s16
        %p307 = scmp.lt.s32.totalorder %s306, 3
        %s308 = scalar_select %p307, %s306, 3
        %s309 = smul.addr %s308, 4
        %s310 = scalar_lea.vmem %s0, %s309
        %s311 = smul.u32 2, %s16
      $region56: #{hand_gesture_cnn_forward.1} parent=51 // pred_fallthru
        _
    $region52: #{hand_gesture_cnn_forward.1} parent=5 // pred_fallthru
      _
    %p312 = scmp.le.s32.totalorder 1, %s16
    %p313 = scmp.lt.s32.totalorder %s16, 3
    %p314 = pnand %p312, %p313
    %p315 = pneg %p314
    // Predicated region
    $region57: #{hand_gesture_cnn_forward.1} parent=5 // pred_check
      _
    $region58: #{hand_gesture_cnn_forward.1} parent=5 // pred_check_branch
      %317 = sbr.rel (%p314) target = $region60
    $region59: #{hand_gesture_cnn_forward.1} parent=5 // pred_region
      %s318 = ssub.s32 %s16, 1
      %s319 = smul.u32 2, %s21
      %p320 = scmp.lt.s32.totalorder %s319, 3
      %s321 = scalar_select %p320, %s319, 3
      %s322 = smul.addr %s321, 4
      %s323 = scalar_lea.vmem %s0, %s322
      %p324 = pneg %p42
      %p325 = pneg %p39
      %p326 = pneg %p63
      %p327 = pneg %p60
      %p328 = pneg %p84
      %p329 = pneg %p81
      %p330 = pneg %p105
      %p331 = pneg %p102
      %p332 = pneg %p126
      %p333 = pneg %p123
      %p334 = pneg %p147
      %p335 = pneg %p144
      %p336 = pneg %p168
      %p337 = pneg %p165
      %p338 = pneg %p189
      %p339 = pneg %p186
      %p340 = pneg %p210
      %p341 = pneg %p207
      %p342 = pneg %p231
      %p343 = pneg %p228
      %p344 = pneg %p257
      %p345 = pneg %p254
      %p346 = scmp.lt.s32.totalorder %s21, 1
      %s347 = scalar_select %p346, %s21, 1
      %s348 = smul.addr %s347, 8
      %s349 = scalar_lea.vmem %s10, %s348
      %s350 = smul.u32 2, %s21
      %p351 = scmp.lt.s32.totalorder %s350, 3
      %s352 = scalar_select %p351, %s350, 3
      %s353 = smul.addr %s352, 4
      %s354 = scalar_lea.vmem %s0, %s353
      %s355 = smul.u32 2, %s21
      %p356 = scmp.lt.s32.totalorder %s21, 1
      %s357 = scalar_select %p356, %s21, 1
      %s358 = smul.addr %s357, 8
      %s359 = scalar_lea.vmem %s10, %s358
      %v360 = vld [vmem:[%s1] sm:$0xff]
      %v361 = vld [vmem:[%s354] sm:$0xff]
      %v363 = vcombine.high %v361, %v361
      %365 = vrot.lane.b32.xlu0 %v361, 17
      %v366 = vpop.permute.xlu0 %365
      %367 = vrot.lane.b32.xlu0 %v363, 17
      %v368 = vpop.permute.xlu0 %367
      %v369 = vlaneseq
      %v370 = vand.u32 %v369, 127
      %vm371 = vcmp.lt.s32.totalorder %v370, 17
      %v372 = vsel %vm371, %v366, %v368
      %v373 = vsel %vm371, %v368, %v366
      %v374 = vld [vmem:[%s5] ss:$8 sm:$0x3]
      %v376 = vlaneseq
      %v377 = vshrl.u32 %v376, 7
      %v378 = vsub.s32 0, %v377
      %v379 = vrot.slane %v374, %v378
      %v380 = vlaneseq
      %v381 = vshrl.u32 %v380, 7
      %v382 = vsub.s32 1, %v381
      %v383 = vrot.slane %v374, %v382
      %v386 = vmul.f32 %v373, %v379
      %v387 = vmul.f32 %v372, %v383
      %388 = vrot.lane.b32.xlu0 %v361, 16
      %v389 = vpop.permute.xlu0 %388
      %390 = vrot.lane.b32.xlu0 %v363, 16
      %v391 = vpop.permute.xlu0 %390
      %vm392 = vcmp.lt.s32.totalorder %v370, 16
      %v393 = vsel %vm392, %v389, %v391
      %v394 = vsel %vm392, %v391, %v389
      %s395 = scalar_lea.vmem %s5, 1
      %v396 = vld [vmem:[%s395] ss:$8 sm:$0x3]
      %v398 = vlaneseq
      %v399 = vshrl.u32 %v398, 7
      %v400 = vsub.s32 0, %v399
      %v401 = vrot.slane %v396, %v400
      %v402 = vlaneseq
      %v403 = vshrl.u32 %v402, 7
      %v404 = vsub.s32 1, %v403
      %v405 = vrot.slane %v396, %v404
      %v408 = vmul.f32 %v394, %v401
      %v409 = vmul.f32 %v393, %v405
      %410 = vrot.lane.b32.xlu0 %v361, 15
      %v411 = vpop.permute.xlu0 %410
      %412 = vrot.lane.b32.xlu0 %v363, 15
      %v413 = vpop.permute.xlu0 %412
      %vm414 = vcmp.lt.s32.totalorder %v370, 15
      %v415 = vsel %vm414, %v411, %v413
      %v416 = vsel %vm414, %v413, %v411
      %s417 = scalar_lea.vmem %s5, 2
      %v418 = vld [vmem:[%s417] ss:$8 sm:$0x3]
      %v420 = vlaneseq
      %v421 = vshrl.u32 %v420, 7
      %v422 = vsub.s32 0, %v421
      %v423 = vrot.slane %v418, %v422
      %v424 = vlaneseq
      %v425 = vshrl.u32 %v424, 7
      %v426 = vsub.s32 1, %v425
      %v427 = vrot.slane %v418, %v426
      %v430 = vmul.f32 %v416, %v423
      %v431 = vmul.f32 %v415, %v427
      %432 = vrot.lane.b32.xlu0 %v361, 1
      %v433 = vpop.permute.xlu0 %432
      %434 = vrot.lane.b32.xlu0 %v363, 1
      %v435 = vpop.permute.xlu0 %434
      %vm436 = vcmp.lt.s32.totalorder %v370, 1
      %v437 = vsel %vm436, %v433, %v435
      %v438 = vsel %vm436, %v435, %v433
      %s439 = scalar_lea.vmem %s5, 3
      %v440 = vld [vmem:[%s439] ss:$8 sm:$0x3]
      %v442 = vlaneseq
      %v443 = vshrl.u32 %v442, 7
      %v444 = vsub.s32 0, %v443
      %v445 = vrot.slane %v440, %v444
      %v446 = vlaneseq
      %v447 = vshrl.u32 %v446, 7
      %v448 = vsub.s32 1, %v447
      %v449 = vrot.slane %v440, %v448
      %v452 = vmul.f32 %v438, %v445
      %v453 = vmul.f32 %v437, %v449
      %454 = vrot.lane.b32.xlu0 %v361, 127
      %v455 = vpop.permute.xlu0 %454
      %456 = vrot.lane.b32.xlu0 %v363, 127
      %v457 = vpop.permute.xlu0 %456
      %vm458 = vcmp.lt.s32.totalorder %v370, 127
      %v459 = vsel %vm458, %v455, %v457
      %v460 = vsel %vm458, %v457, %v455
      %s461 = scalar_lea.vmem %s5, 5
      %v462 = vld [vmem:[%s461] ss:$8 sm:$0x3]
      %v464 = vlaneseq
      %v465 = vshrl.u32 %v464, 7
      %v466 = vsub.s32 0, %v465
      %v467 = vrot.slane %v462, %v466
      %v468 = vlaneseq
      %v469 = vshrl.u32 %v468, 7
      %v470 = vsub.s32 1, %v469
      %v471 = vrot.slane %v462, %v470
      %v474 = vmul.f32 %v459, %v467
      %v475 = vmul.f32 %v460, %v471
      %476 = vrot.lane.b32.xlu0 %v361, 113
      %v477 = vpop.permute.xlu0 %476
      %478 = vrot.lane.b32.xlu0 %v363, 113
      %v479 = vpop.permute.xlu0 %478
      %vm480 = vcmp.lt.s32.totalorder %v370, 113
      %v481 = vsel %vm480, %v477, %v479
      %v482 = vsel %vm480, %v479, %v477
      %s483 = scalar_lea.vmem %s5, 6
      %v484 = vld [vmem:[%s483] ss:$8 sm:$0x3]
      %v486 = vlaneseq
      %v487 = vshrl.u32 %v486, 7
      %v488 = vsub.s32 0, %v487
      %v489 = vrot.slane %v484, %v488
      %v490 = vlaneseq
      %v491 = vshrl.u32 %v490, 7
      %v492 = vsub.s32 1, %v491
      %v493 = vrot.slane %v484, %v492
      %v496 = vmul.f32 %v481, %v489
      %v497 = vmul.f32 %v482, %v493
      %498 = vrot.lane.b32.xlu0 %v361, 112
      %v499 = vpop.permute.xlu0 %498
      %500 = vrot.lane.b32.xlu0 %v363, 112
      %v501 = vpop.permute.xlu0 %500
      %vm502 = vcmp.lt.s32.totalorder %v370, 112
      %v503 = vsel %vm502, %v499, %v501
      %v504 = vsel %vm502, %v501, %v499
      %s505 = scalar_lea.vmem %s5, 7
      %v506 = vld [vmem:[%s505] ss:$8 sm:$0x3]
      %v508 = vlaneseq
      %v509 = vshrl.u32 %v508, 7
      %v510 = vsub.s32 0, %v509
      %v511 = vrot.slane %v506, %v510
      %v512 = vlaneseq
      %v513 = vshrl.u32 %v512, 7
      %v514 = vsub.s32 1, %v513
      %v515 = vrot.slane %v506, %v514
      %v518 = vmul.f32 %v503, %v511
      %v519 = vmul.f32 %v504, %v515
      %520 = vrot.lane.b32.xlu0 %v361, 111
      %v521 = vpop.permute.xlu0 %520
      %522 = vrot.lane.b32.xlu0 %v363, 111
      %v523 = vpop.permute.xlu0 %522
      %vm524 = vcmp.lt.s32.totalorder %v370, 111
      %v525 = vsel %vm524, %v521, %v523
      %v526 = vsel %vm524, %v523, %v521
      %s527 = scalar_lea.vmem %s5, 16
      %v528 = vld [vmem:[%s527] ss:$8 sm:$0x3]
      %v530 = vlaneseq
      %v531 = vshrl.u32 %v530, 7
      %v532 = vsub.s32 0, %v531
      %v533 = vrot.slane %v528, %v532
      %v534 = vlaneseq
      %v535 = vshrl.u32 %v534, 7
      %v536 = vsub.s32 1, %v535
      %v537 = vrot.slane %v528, %v536
      %v540 = vmul.f32 %v525, %v533
      %v541 = vmul.f32 %v526, %v537
      %v544 = vrot.slane %v408, 4
      %v545 = vrot.slane %v409, 4
      %v550 = vrot.slane %v452, 4
      %v551 = vrot.slane %v453, 4
      %v556 = vrot.slane %v474, 4
      %v557 = vrot.slane %v475, 4
      %v562 = vrot.slane %v518, 4
      %v563 = vrot.slane %v519, 4
      %vm566 = vcmask 1043456
      %v567 = vsel %vm566, %v386, %v544
      %v568 = vsel %vm566, %v387, %v545
      %v569 = vsel %vm566, %v430, %v550
      %v570 = vsel %vm566, %v431, %v551
      %v571 = vsel %vm566, %v361, %v556
      %v572 = vsel %vm566, %v363, %v557
      %v573 = vsel %vm566, %v496, %v562
      %v574 = vsel %vm566, %v497, %v563
      %v575 = vld [vmem:[%s2] sm:$0xff]
      %577 = vset.pattern.permute.xlu0 0
      %578 = vperm.xlu0 %577, %v575
      %v579 = vpop.permute.xlu0 %578
      %vm581 = vcmask 293888
      %v583 = vsel %vm581, %v360, 0
      %v586 = vsel %vm566, %v540, 0
      %v589 = vsel %vm566, %v541, 0
      %591 = vmatprep.subr.mxu0 0.0
      %592 = vmatpush1.msra.mxu0 0.0
      %593 = vmatprep.subr.mxu0 0.0
      %594 = vmatpush1.msra.mxu0 0.0
      %595 = vmatprep.subr.mxu0 0.0
      %596 = vmatpush1.msra.mxu0 0.0
      %597 = vmatprep.subr.mxu0 0.0
      %598 = vmatpush1.msra.mxu0 0.0
      %599 = vmatprep.subr.mxu0 0.0
      %600 = vmatpush1.msra.mxu0 0.0
      %601 = vmatprep.subr.mxu0 0.0
      %602 = vmatpush1.msra.mxu0 0.0
      %603 = vmatprep.subr.mxu0 0.0
      %604 = vmatpush1.msra.mxu0 0.0
      %605 = vmatprep.subr.mxu0 0.0
      %606 = vmatpush1.msra.mxu0 0.0
      %607 = vmatprep.subr.mxu0 0.0
      %608 = vmatpush1.msra.mxu0 0.0
      %609 = vmatprep.subr.mxu0 0.0
      %610 = vmatpush1.msra.mxu0 0.0
      %611 = vmatprep.subr.mxu0 0.0
      %612 = vmatpush1.msra.mxu0 0.0
      %613 = vmatprep.subr.mxu0 %v589
      %614 = vmatpush1.msra.mxu0 %v586
      %615 = vmatprep.subr.mxu0 %v574
      %616 = vmatpush1.msra.mxu0 %v573
      %617 = vmatprep.subr.mxu0 %v572
      %618 = vmatpush1.msra.mxu0 %v571
      %619 = vmatprep.subr.mxu0 %v570
      %620 = vmatpush1.msra.mxu0 %v569
      %621 = vmatprep.subr.mxu0 %v568
      %622 = vmatpush1.msra.mxu0 %v567
      %623 = vmatprep.subr.mxu0 0.0
      %624 = vmatpush2.msra.mxu0 0.0
      %625 = vmatprep.subr.mxu0 0.0
      %626 = vmatpush2.msra.mxu0 0.0
      %627 = vmatprep.subr.mxu0 0.0
      %628 = vmatpush2.msra.mxu0 0.0
      %629 = vmatprep.subr.mxu0 0.0
      %630 = vmatpush2.msra.mxu0 0.0
      %631 = vmatprep.subr.mxu0 0.0
      %632 = vmatpush2.msra.mxu0 0.0
      %633 = vmatprep.subr.mxu0 0.0
      %634 = vmatpush2.msra.mxu0 0.0
      %635 = vmatprep.subr.mxu0 0.0
      %636 = vmatpush2.msra.mxu0 0.0
      %637 = vmatprep.subr.mxu0 0.0
      %638 = vmatpush2.msra.mxu0 0.0
      %639 = vmatprep.subr.mxu0 0.0
      %640 = vmatpush2.msra.mxu0 0.0
      %641 = vmatprep.subr.mxu0 0.0
      %642 = vmatpush2.msra.mxu0 0.0
      %643 = vmatprep.subr.mxu0 0.0
      %644 = vmatpush2.msra.mxu0 0.0
      %645 = vmatprep.subr.mxu0 0.0
      %646 = vmatpush2.msra.mxu0 0.0
      %647 = vmatprep.subr.mxu0 0.0
      %648 = vmatpush2.msra.mxu0 0.0
      %649 = vmatprep.subr.mxu0 0.0
      %650 = vmatpush2.msra.mxu0 0.0
      %651 = vmatprep.subr.mxu0 0.0
      %652 = vmatpush2.msra.mxu0 0.0
      %653 = vmatprep.subr.mxu0 0.0
      %654 = vmatpush2.msra.mxu0 0.0
      %655 = vmatprep.mubr.f32.mxu0 0.0
      %656 = vmatmul.mubr.f32.gmra.mxu0 %v583
      %v657 = vpop.f32.mrf.mxu0
      %v658 = vadd.f32 %v579, %v657
      %v659 = vpop.f32.mrf.mxu0
      %v660 = vadd.f32 %v579, %v659
      %661 = vdwg.mxu0
      %v662 = vmax.f32 %v658, 0.0
      %v663 = vmax.f32 %v660, 0.0
      %664 = vrot.lane.b32.xlu0 %v662, 127
      %v665 = vpop.permute.xlu0 %664
      %666 = vrot.lane.b32.xlu0 %v663, 127
      %v667 = vpop.permute.xlu0 %666
      %v668 = vsel %vm458, %v665, %v667
      %v669 = vsel %vm458, %v667, %v665
      %v670 = vmax.f32 %v662, %v668
      %v671 = vmax.f32 %v663, %v669
      %672 = vrot.lane.b32.xlu0 %v662, 112
      %v673 = vpop.permute.xlu0 %672
      %674 = vrot.lane.b32.xlu0 %v663, 112
      %v675 = vpop.permute.xlu0 %674
      %v676 = vsel %vm502, %v673, %v675
      %v677 = vsel %vm502, %v675, %v673
      %678 = vrot.lane.b32.xlu0 %v662, 111
      %v679 = vpop.permute.xlu0 %678
      %680 = vrot.lane.b32.xlu0 %v663, 111
      %v681 = vpop.permute.xlu0 %680
      %v682 = vsel %vm524, %v679, %v681
      %v683 = vsel %vm524, %v681, %v679
      %v684 = vmax.f32 %v676, %v682
      %v685 = vmax.f32 %v677, %v683
      %v686 = vmax.f32 %v670, %v684
      %v687 = vmax.f32 %v671, %v685
      %v688 = vld [vmem:[%s3] sm:$0xff]
      %v689 = vld [vmem:[%s3 + $0x8] sm:$0xff]
      %690 = vrot.lane.b32.xlu0 %v686, 34
      %v691 = vpop.permute.xlu0 %690
      %692 = vrot.lane.b32.xlu0 %v687, 34
      %v693 = vpop.permute.xlu0 %692
      %vm694 = vcmp.lt.s32.totalorder %v370, 34
      %v695 = vsel %vm694, %v691, %v693
      %v696 = vsel %vm694, %v693, %v691
      %v697 = vld [vmem:[%s6] ss:$8 sm:$0x3]
      %v699 = vlaneseq
      %v700 = vshrl.u32 %v699, 7
      %v701 = vsub.s32 0, %v700
      %v702 = vrot.slane %v697, %v701
      %v703 = vlaneseq
      %v704 = vshrl.u32 %v703, 7
      %v705 = vsub.s32 1, %v704
      %v706 = vrot.slane %v697, %v705
      %v709 = vmul.f32 %v696, %v702
      %v710 = vmul.f32 %v695, %v706
      %711 = vrot.lane.b32.xlu0 %v686, 32
      %v712 = vpop.permute.xlu0 %711
      %713 = vrot.lane.b32.xlu0 %v687, 32
      %v714 = vpop.permute.xlu0 %713
      %vm715 = vcmp.lt.s32.totalorder %v370, 32
      %v716 = vsel %vm715, %v712, %v714
      %v717 = vsel %vm715, %v714, %v712
      %s718 = scalar_lea.vmem %s6, 1
      %v719 = vld [vmem:[%s718] ss:$8 sm:$0x3]
      %v721 = vlaneseq
      %v722 = vshrl.u32 %v721, 7
      %v723 = vsub.s32 0, %v722
      %v724 = vrot.slane %v719, %v723
      %v725 = vlaneseq
      %v726 = vshrl.u32 %v725, 7
      %v727 = vsub.s32 1, %v726
      %v728 = vrot.slane %v719, %v727
      %v731 = vmul.f32 %v717, %v724
      %v732 = vmul.f32 %v716, %v728
      %733 = vrot.lane.b32.xlu0 %v686, 30
      %v734 = vpop.permute.xlu0 %733
      %735 = vrot.lane.b32.xlu0 %v687, 30
      %v736 = vpop.permute.xlu0 %735
      %vm737 = vcmp.lt.s32.totalorder %v370, 30
      %v738 = vsel %vm737, %v734, %v736
      %v739 = vsel %vm737, %v736, %v734
      %s740 = scalar_lea.vmem %s6, 2
      %v741 = vld [vmem:[%s740] ss:$8 sm:$0x3]
      %v743 = vlaneseq
      %v744 = vshrl.u32 %v743, 7
      %v745 = vsub.s32 0, %v744
      %v746 = vrot.slane %v741, %v745
      %v747 = vlaneseq
      %v748 = vshrl.u32 %v747, 7
      %v749 = vsub.s32 1, %v748
      %v750 = vrot.slane %v741, %v749
      %v753 = vmul.f32 %v739, %v746
      %v754 = vmul.f32 %v738, %v750
      %755 = vrot.lane.b32.xlu0 %v686, 2
      %v756 = vpop.permute.xlu0 %755
      %757 = vrot.lane.b32.xlu0 %v687, 2
      %v758 = vpop.permute.xlu0 %757
      %vm759 = vcmp.lt.s32.totalorder %v370, 2
      %v760 = vsel %vm759, %v756, %v758
      %v761 = vsel %vm759, %v758, %v756
      %s762 = scalar_lea.vmem %s6, 3
      %v763 = vld [vmem:[%s762] ss:$8 sm:$0x3]
      %v765 = vlaneseq
      %v766 = vshrl.u32 %v765, 7
      %v767 = vsub.s32 0, %v766
      %v768 = vrot.slane %v763, %v767
      %v769 = vlaneseq
      %v770 = vshrl.u32 %v769, 7
      %v771 = vsub.s32 1, %v770
      %v772 = vrot.slane %v763, %v771
      %v775 = vmul.f32 %v761, %v768
      %v776 = vmul.f32 %v760, %v772
      %777 = vrot.lane.b32.xlu0 %v686, 126
      %v778 = vpop.permute.xlu0 %777
      %779 = vrot.lane.b32.xlu0 %v687, 126
      %v780 = vpop.permute.xlu0 %779
      %vm781 = vcmp.lt.s32.totalorder %v370, 126
      %v782 = vsel %vm781, %v778, %v780
      %v783 = vsel %vm781, %v780, %v778
      %s784 = scalar_lea.vmem %s6, 5
      %v785 = vld [vmem:[%s784] ss:$8 sm:$0x3]
      %v787 = vlaneseq
      %v788 = vshrl.u32 %v787, 7
      %v789 = vsub.s32 0, %v788
      %v790 = vrot.slane %v785, %v789
      %v791 = vlaneseq
      %v792 = vshrl.u32 %v791, 7
      %v793 = vsub.s32 1, %v792
      %v794 = vrot.slane %v785, %v793
      %v797 = vmul.f32 %v782, %v790
      %v798 = vmul.f32 %v783, %v794
      %799 = vrot.lane.b32.xlu0 %v686, 98
      %v800 = vpop.permute.xlu0 %799
      %801 = vrot.lane.b32.xlu0 %v687, 98
      %v802 = vpop.permute.xlu0 %801
      %vm803 = vcmp.lt.s32.totalorder %v370, 98
      %v804 = vsel %vm803, %v800, %v802
      %v805 = vsel %vm803, %v802, %v800
      %s806 = scalar_lea.vmem %s6, 6
      %v807 = vld [vmem:[%s806] ss:$8 sm:$0x3]
      %v809 = vlaneseq
      %v810 = vshrl.u32 %v809, 7
      %v811 = vsub.s32 0, %v810
      %v812 = vrot.slane %v807, %v811
      %v813 = vlaneseq
      %v814 = vshrl.u32 %v813, 7
      %v815 = vsub.s32 1, %v814
      %v816 = vrot.slane %v807, %v815
      %v819 = vmul.f32 %v804, %v812
      %v820 = vmul.f32 %v805, %v816
      %821 = vrot.lane.b32.xlu0 %v686, 96
      %v822 = vpop.permute.xlu0 %821
      %823 = vrot.lane.b32.xlu0 %v687, 96
      %v824 = vpop.permute.xlu0 %823
      %vm825 = vcmp.lt.s32.totalorder %v370, 96
      %v826 = vsel %vm825, %v822, %v824
      %v827 = vsel %vm825, %v824, %v822
      %s828 = scalar_lea.vmem %s6, 7
      %v829 = vld [vmem:[%s828] ss:$8 sm:$0x3]
      %v831 = vlaneseq
      %v832 = vshrl.u32 %v831, 7
      %v833 = vsub.s32 0, %v832
      %v834 = vrot.slane %v829, %v833
      %v835 = vlaneseq
      %v836 = vshrl.u32 %v835, 7
      %v837 = vsub.s32 1, %v836
      %v838 = vrot.slane %v829, %v837
      %v841 = vmul.f32 %v826, %v834
      %v842 = vmul.f32 %v827, %v838
      %843 = vrot.lane.b32.xlu0 %v686, 94
      %v844 = vpop.permute.xlu0 %843
      %845 = vrot.lane.b32.xlu0 %v687, 94
      %v846 = vpop.permute.xlu0 %845
      %vm847 = vcmp.lt.s32.totalorder %v370, 94
      %v848 = vsel %vm847, %v844, %v846
      %v849 = vsel %vm847, %v846, %v844
      %s850 = scalar_lea.vmem %s6, 16
      %v851 = vld [vmem:[%s850] ss:$8 sm:$0x3]
      %v853 = vlaneseq
      %v854 = vshrl.u32 %v853, 7
      %v855 = vsub.s32 0, %v854
      %v856 = vrot.slane %v851, %v855
      %v857 = vlaneseq
      %v858 = vshrl.u32 %v857, 7
      %v859 = vsub.s32 1, %v858
      %v860 = vrot.slane %v851, %v859
      %v863 = vmul.f32 %v848, %v856
      %v864 = vmul.f32 %v849, %v860
      %v865 = vld [vmem:[%s4] sm:$0xff]
      %v866 = vld [vmem:[%s4 + $0x8] sm:$0xff]
      %868 = vset.pattern.permute.xlu0 0
      %869 = vperm.xlu0 %868, %v865
      %v870 = vpop.permute.xlu0 %869
      %873 = vset.pattern.permute.xlu0 0
      %874 = vperm.xlu0 %873, %v866
      %v875 = vpop.permute.xlu0 %874
      %vm877 = vcmask 588800
      %v879 = vsel %vm877, %v688, 0
      %v882 = vsel %vm877, %v689, 0
      %884 = vmatprep.subr.mxu0 0.0
      %885 = vmatpush1.msra.mxu0 0.0
      %886 = vmatprep.subr.mxu0 0.0
      %887 = vmatpush1.msra.mxu0 0.0
      %888 = vmatprep.subr.mxu0 0.0
      %889 = vmatpush1.msra.mxu0 0.0
      %890 = vmatprep.subr.mxu0 0.0
      %891 = vmatpush1.msra.mxu0 0.0
      %892 = vmatprep.subr.mxu0 0.0
      %893 = vmatpush1.msra.mxu0 0.0
      %894 = vmatprep.subr.mxu0 0.0
      %895 = vmatpush1.msra.mxu0 0.0
      %896 = vmatprep.subr.mxu0 0.0
      %897 = vmatpush1.msra.mxu0 0.0
      %898 = vmatprep.subr.mxu0 %v864
      %899 = vmatpush1.msra.mxu0 %v863
      %900 = vmatprep.subr.mxu0 %v842
      %901 = vmatpush1.msra.mxu0 %v841
      %902 = vmatprep.subr.mxu0 %v820
      %903 = vmatpush1.msra.mxu0 %v819
      %904 = vmatprep.subr.mxu0 %v798
      %905 = vmatpush1.msra.mxu0 %v797
      %906 = vmatprep.subr.mxu0 %v687
      %907 = vmatpush1.msra.mxu0 %v686
      %908 = vmatprep.subr.mxu0 %v776
      %909 = vmatpush1.msra.mxu0 %v775
      %910 = vmatprep.subr.mxu0 %v754
      %911 = vmatpush1.msra.mxu0 %v753
      %912 = vmatprep.subr.mxu0 %v732
      %913 = vmatpush1.msra.mxu0 %v731
      %914 = vmatprep.subr.mxu0 %v710
      %915 = vmatpush1.msra.mxu0 %v709
      %916 = vmatprep.subr.mxu0 0.0
      %917 = vmatpush2.msra.mxu0 0.0
      %918 = vmatprep.subr.mxu0 0.0
      %919 = vmatpush2.msra.mxu0 0.0
      %920 = vmatprep.subr.mxu0 0.0
      %921 = vmatpush2.msra.mxu0 0.0
      %922 = vmatprep.subr.mxu0 0.0
      %923 = vmatpush2.msra.mxu0 0.0
      %924 = vmatprep.subr.mxu0 0.0
      %925 = vmatpush2.msra.mxu0 0.0
      %926 = vmatprep.subr.mxu0 0.0
      %927 = vmatpush2.msra.mxu0 0.0
      %928 = vmatprep.subr.mxu0 0.0
      %929 = vmatpush2.msra.mxu0 0.0
      %930 = vmatprep.subr.mxu0 0.0
      %931 = vmatpush2.msra.mxu0 0.0
      %932 = vmatprep.subr.mxu0 0.0
      %933 = vmatpush2.msra.mxu0 0.0
      %934 = vmatprep.subr.mxu0 0.0
      %935 = vmatpush2.msra.mxu0 0.0
      %936 = vmatprep.subr.mxu0 0.0
      %937 = vmatpush2.msra.mxu0 0.0
      %938 = vmatprep.subr.mxu0 0.0
      %939 = vmatpush2.msra.mxu0 0.0
      %940 = vmatprep.subr.mxu0 0.0
      %941 = vmatpush2.msra.mxu0 0.0
      %942 = vmatprep.subr.mxu0 0.0
      %943 = vmatpush2.msra.mxu0 0.0
      %944 = vmatprep.subr.mxu0 0.0
      %945 = vmatpush2.msra.mxu0 0.0
      %946 = vmatprep.subr.mxu0 0.0
      %947 = vmatpush2.msra.mxu0 0.0
      %948 = vmatprep.mubr.f32.mxu0 0.0
      %949 = vmatmul.mubr.f32.gmra.mxu0 %v879
      %v950 = vpop.f32.mrf.mxu0
      %v951 = vadd.f32 %v870, %v950
      %v952 = vpop.f32.mrf.mxu0
      %v953 = vadd.f32 %v870, %v952
      %954 = vmatprep.mubr.f32.mxu0 0.0
      %955 = vmatmul.mubr.f32.gmra.mxu0 %v882
      %v956 = vpop.f32.mrf.mxu0
      %v957 = vadd.f32 %v875, %v956
      %v958 = vpop.f32.mrf.mxu0
      %v959 = vadd.f32 %v875, %v958
      %960 = vdwg.mxu0
      %v961 = vmax.f32 %v951, 0.0
      %v962 = vmax.f32 %v953, 0.0
      %v963 = vmax.f32 %v957, 0.0
      %v964 = vmax.f32 %v959, 0.0
      %965 = vrot.lane.b32.xlu0 %v961, 126
      %v966 = vpop.permute.xlu0 %965
      %967 = vrot.lane.b32.xlu0 %v963, 126
      %v968 = vpop.permute.xlu0 %967
      %969 = vrot.lane.b32.xlu0 %v962, 126
      %v970 = vpop.permute.xlu0 %969
      %971 = vrot.lane.b32.xlu0 %v964, 126
      %v972 = vpop.permute.xlu0 %971
      %v973 = vsel %vm781, %v966, %v970
      %v974 = vsel %vm781, %v968, %v972
      %v975 = vsel %vm781, %v970, %v966
      %v976 = vsel %vm781, %v972, %v968
      %v977 = vmax.f32 %v961, %v973
      %v978 = vmax.f32 %v962, %v975
      %v979 = vmax.f32 %v963, %v974
      %v980 = vmax.f32 %v964, %v976
      %981 = vrot.lane.b32.xlu0 %v961, 96
      %v982 = vpop.permute.xlu0 %981
      %983 = vrot.lane.b32.xlu0 %v963, 96
      %v984 = vpop.permute.xlu0 %983
      %985 = vrot.lane.b32.xlu0 %v962, 96
      %v986 = vpop.permute.xlu0 %985
      %987 = vrot.lane.b32.xlu0 %v964, 96
      %v988 = vpop.permute.xlu0 %987
      %v989 = vsel %vm825, %v982, %v986
      %v990 = vsel %vm825, %v984, %v988
      %v991 = vsel %vm825, %v986, %v982
      %v992 = vsel %vm825, %v988, %v984
      %993 = vrot.lane.b32.xlu0 %v961, 94
      %v994 = vpop.permute.xlu0 %993
      %995 = vrot.lane.b32.xlu0 %v963, 94
      %v996 = vpop.permute.xlu0 %995
      %997 = vrot.lane.b32.xlu0 %v962, 94
      %v998 = vpop.permute.xlu0 %997
      %999 = vrot.lane.b32.xlu0 %v964, 94
      %v1000 = vpop.permute.xlu0 %999
      %v1001 = vsel %vm847, %v994, %v998
      %v1002 = vsel %vm847, %v996, %v1000
      %v1003 = vsel %vm847, %v998, %v994
      %v1004 = vsel %vm847, %v1000, %v996
      %v1005 = vmax.f32 %v989, %v1001
      %v1006 = vmax.f32 %v991, %v1003
      %v1007 = vmax.f32 %v990, %v1002
      %v1008 = vmax.f32 %v992, %v1004
      %v1009 = vmax.f32 %v977, %v1005
      %v1010 = vmax.f32 %v978, %v1006
      %v1011 = vmax.f32 %v979, %v1007
      %v1012 = vmax.f32 %v980, %v1008
      %v1013 = vld [vmem:[%s7] sm:$0xff]
      %v1014 = vld [vmem:[%s7 + $0x8] sm:$0xff]
      %v1015 = vlaneseq
      %v1016 = vshrl.u32 %v1015, 7
      %v1017 = vsub.s32 0, %v1016
      %v1018 = vrot.slane %v1009, %v1017
      %v1019 = vlaneseq
      %v1020 = vshrl.u32 %v1019, 7
      %v1021 = vsub.s32 0, %v1020
      %v1022 = vrot.slane %v1010, %v1021
      %v1023 = vmul.f32 %v1013, %v1018
      %v1024 = vmul.f32 %v1014, %v1022
      %s1025 = scalar_lea.vmem %s7, 16
      %v1026 = vld [vmem:[%s1025] sm:$0xff]
      %v1027 = vld [vmem:[%s1025 + $0x8] sm:$0xff]
      %v1028 = vlaneseq
      %v1029 = vshrl.u32 %v1028, 7
      %v1030 = vsub.s32 1, %v1029
      %v1031 = vrot.slane %v1009, %v1030
      %v1032 = vlaneseq
      %v1033 = vshrl.u32 %v1032, 7
      %v1034 = vsub.s32 1, %v1033
      %v1035 = vrot.slane %v1010, %v1034
      %v1036 = vmul.f32 %v1026, %v1031
      %v1037 = vmul.f32 %v1027, %v1035
      %v1038 = vadd.f32 %v1023, %v1036
      %v1039 = vadd.f32 %v1024, %v1037
      %s1040 = scalar_lea.vmem %s7, 32
      %v1041 = vld [vmem:[%s1040] sm:$0xff]
      %v1042 = vld [vmem:[%s1040 + $0x8] sm:$0xff]
      %v1043 = vlaneseq
      %v1044 = vshrl.u32 %v1043, 7
      %v1045 = vsub.s32 2, %v1044
      %v1046 = vrot.slane %v1009, %v1045
      %v1047 = vlaneseq
      %v1048 = vshrl.u32 %v1047, 7
      %v1049 = vsub.s32 2, %v1048
      %v1050 = vrot.slane %v1010, %v1049
      %v1051 = vmul.f32 %v1041, %v1046
      %v1052 = vmul.f32 %v1042, %v1050
      %v1053 = vadd.f32 %v1038, %v1051
      %v1054 = vadd.f32 %v1039, %v1052
      %s1055 = scalar_lea.vmem %s7, 48
      %v1056 = vld [vmem:[%s1055] sm:$0xff]
      %v1057 = vld [vmem:[%s1055 + $0x8] sm:$0xff]
      %v1058 = vlaneseq
      %v1059 = vshrl.u32 %v1058, 7
      %v1060 = vsub.s32 3, %v1059
      %v1061 = vrot.slane %v1009, %v1060
      %v1062 = vlaneseq
      %v1063 = vshrl.u32 %v1062, 7
      %v1064 = vsub.s32 3, %v1063
      %v1065 = vrot.slane %v1010, %v1064
      %v1066 = vmul.f32 %v1056, %v1061
      %v1067 = vmul.f32 %v1057, %v1065
      %v1068 = vadd.f32 %v1053, %v1066
      %v1069 = vadd.f32 %v1054, %v1067
      %s1070 = scalar_lea.vmem %s7, 64
      %v1071 = vld [vmem:[%s1070] sm:$0xff]
      %v1072 = vld [vmem:[%s1070 + $0x8] sm:$0xff]
      %v1073 = vlaneseq
      %v1074 = vshrl.u32 %v1073, 7
      %v1075 = vsub.s32 4, %v1074
      %v1076 = vrot.slane %v1009, %v1075
      %v1077 = vlaneseq
      %v1078 = vshrl.u32 %v1077, 7
      %v1079 = vsub.s32 4, %v1078
      %v1080 = vrot.slane %v1010, %v1079
      %v1081 = vmul.f32 %v1071, %v1076
      %v1082 = vmul.f32 %v1072, %v1080
      %v1083 = vadd.f32 %v1068, %v1081
      %v1084 = vadd.f32 %v1069, %v1082
      %s1085 = scalar_lea.vmem %s7, 80
      %v1086 = vld [vmem:[%s1085] sm:$0xff]
      %v1087 = vld [vmem:[%s1085 + $0x8] sm:$0xff]
      %v1088 = vlaneseq
      %v1089 = vshrl.u32 %v1088, 7
      %v1090 = vsub.s32 5, %v1089
      %v1091 = vrot.slane %v1009, %v1090
      %v1092 = vlaneseq
      %v1093 = vshrl.u32 %v1092, 7
      %v1094 = vsub.s32 5, %v1093
      %v1095 = vrot.slane %v1010, %v1094
      %v1096 = vmul.f32 %v1086, %v1091
      %v1097 = vmul.f32 %v1087, %v1095
      %v1098 = vadd.f32 %v1083, %v1096
      %v1099 = vadd.f32 %v1084, %v1097
      %s1100 = scalar_lea.vmem %s7, 96
      %v1101 = vld [vmem:[%s1100] sm:$0xff]
      %v1102 = vld [vmem:[%s1100 + $0x8] sm:$0xff]
      %v1103 = vlaneseq
      %v1104 = vshrl.u32 %v1103, 7
      %v1105 = vsub.s32 6, %v1104
      %v1106 = vrot.slane %v1009, %v1105
      %v1107 = vlaneseq
      %v1108 = vshrl.u32 %v1107, 7
      %v1109 = vsub.s32 6, %v1108
      %v1110 = vrot.slane %v1010, %v1109
      %v1111 = vmul.f32 %v1101, %v1106
      %v1112 = vmul.f32 %v1102, %v1110
      %v1113 = vadd.f32 %v1098, %v1111
      %v1114 = vadd.f32 %v1099, %v1112
      %s1115 = scalar_lea.vmem %s7, 112
      %v1116 = vld [vmem:[%s1115] sm:$0xff]
      %v1117 = vld [vmem:[%s1115 + $0x8] sm:$0xff]
      %v1118 = vlaneseq
      %v1119 = vshrl.u32 %v1118, 7
      %v1120 = vsub.s32 7, %v1119
      %v1121 = vrot.slane %v1009, %v1120
      %v1122 = vlaneseq
      %v1123 = vshrl.u32 %v1122, 7
      %v1124 = vsub.s32 7, %v1123
      %v1125 = vrot.slane %v1010, %v1124
      %v1126 = vmul.f32 %v1116, %v1121
      %v1127 = vmul.f32 %v1117, %v1125
      %v1128 = vadd.f32 %v1113, %v1126
      %v1129 = vadd.f32 %v1114, %v1127
      %s1130 = scalar_lea.vmem %s7, 128
      %v1131 = vld [vmem:[%s1130] sm:$0xff]
      %v1132 = vld [vmem:[%s1130 + $0x8] sm:$0xff]
      %v1133 = vlaneseq
      %v1134 = vshrl.u32 %v1133, 7
      %v1135 = vsub.s32 0, %v1134
      %v1136 = vrot.slane %v1011, %v1135
      %v1137 = vlaneseq
      %v1138 = vshrl.u32 %v1137, 7
      %v1139 = vsub.s32 0, %v1138
      %v1140 = vrot.slane %v1012, %v1139
      %v1141 = vmul.f32 %v1131, %v1136
      %v1142 = vmul.f32 %v1132, %v1140
      %v1143 = vadd.f32 %v1128, %v1141
      %v1144 = vadd.f32 %v1129, %v1142
      %s1145 = scalar_lea.vmem %s7, 144
      %v1146 = vld [vmem:[%s1145] sm:$0xff]
      %v1147 = vld [vmem:[%s1145 + $0x8] sm:$0xff]
      %v1148 = vlaneseq
      %v1149 = vshrl.u32 %v1148, 7
      %v1150 = vsub.s32 1, %v1149
      %v1151 = vrot.slane %v1011, %v1150
      %v1152 = vlaneseq
      %v1153 = vshrl.u32 %v1152, 7
      %v1154 = vsub.s32 1, %v1153
      %v1155 = vrot.slane %v1012, %v1154
      %v1156 = vmul.f32 %v1146, %v1151
      %v1157 = vmul.f32 %v1147, %v1155
      %v1158 = vadd.f32 %v1143, %v1156
      %v1159 = vadd.f32 %v1144, %v1157
      %s1160 = scalar_lea.vmem %s7, 160
      %v1161 = vld [vmem:[%s1160] sm:$0xff]
      %v1162 = vld [vmem:[%s1160 + $0x8] sm:$0xff]
      %v1163 = vlaneseq
      %v1164 = vshrl.u32 %v1163, 7
      %v1165 = vsub.s32 2, %v1164
      %v1166 = vrot.slane %v1011, %v1165
      %v1167 = vlaneseq
      %v1168 = vshrl.u32 %v1167, 7
      %v1169 = vsub.s32 2, %v1168
      %v1170 = vrot.slane %v1012, %v1169
      %v1171 = vmul.f32 %v1161, %v1166
      %v1172 = vmul.f32 %v1162, %v1170
      %v1173 = vadd.f32 %v1158, %v1171
      %v1174 = vadd.f32 %v1159, %v1172
      %s1175 = scalar_lea.vmem %s7, 176
      %v1176 = vld [vmem:[%s1175] sm:$0xff]
      %v1177 = vld [vmem:[%s1175 + $0x8] sm:$0xff]
      %v1178 = vlaneseq
      %v1179 = vshrl.u32 %v1178, 7
      %v1180 = vsub.s32 3, %v1179
      %v1181 = vrot.slane %v1011, %v1180
      %v1182 = vlaneseq
      %v1183 = vshrl.u32 %v1182, 7
      %v1184 = vsub.s32 3, %v1183
      %v1185 = vrot.slane %v1012, %v1184
      %v1186 = vmul.f32 %v1176, %v1181
      %v1187 = vmul.f32 %v1177, %v1185
      %v1188 = vadd.f32 %v1173, %v1186
      %v1189 = vadd.f32 %v1174, %v1187
      %s1190 = scalar_lea.vmem %s7, 192
      %v1191 = vld [vmem:[%s1190] sm:$0xff]
      %v1192 = vld [vmem:[%s1190 + $0x8] sm:$0xff]
      %v1193 = vlaneseq
      %v1194 = vshrl.u32 %v1193, 7
      %v1195 = vsub.s32 4, %v1194
      %v1196 = vrot.slane %v1011, %v1195
      %v1197 = vlaneseq
      %v1198 = vshrl.u32 %v1197, 7
      %v1199 = vsub.s32 4, %v1198
      %v1200 = vrot.slane %v1012, %v1199
      %v1201 = vmul.f32 %v1191, %v1196
      %v1202 = vmul.f32 %v1192, %v1200
      %v1203 = vadd.f32 %v1188, %v1201
      %v1204 = vadd.f32 %v1189, %v1202
      %s1205 = scalar_lea.vmem %s7, 208
      %v1206 = vld [vmem:[%s1205] sm:$0xff]
      %v1207 = vld [vmem:[%s1205 + $0x8] sm:$0xff]
      %v1208 = vlaneseq
      %v1209 = vshrl.u32 %v1208, 7
      %v1210 = vsub.s32 5, %v1209
      %v1211 = vrot.slane %v1011, %v1210
      %v1212 = vlaneseq
      %v1213 = vshrl.u32 %v1212, 7
      %v1214 = vsub.s32 5, %v1213
      %v1215 = vrot.slane %v1012, %v1214
      %v1216 = vmul.f32 %v1206, %v1211
      %v1217 = vmul.f32 %v1207, %v1215
      %v1218 = vadd.f32 %v1203, %v1216
      %v1219 = vadd.f32 %v1204, %v1217
      %s1220 = scalar_lea.vmem %s7, 224
      %v1221 = vld [vmem:[%s1220] sm:$0xff]
      %v1222 = vld [vmem:[%s1220 + $0x8] sm:$0xff]
      %v1223 = vlaneseq
      %v1224 = vshrl.u32 %v1223, 7
      %v1225 = vsub.s32 6, %v1224
      %v1226 = vrot.slane %v1011, %v1225
      %v1227 = vlaneseq
      %v1228 = vshrl.u32 %v1227, 7
      %v1229 = vsub.s32 6, %v1228
      %v1230 = vrot.slane %v1012, %v1229
      %v1231 = vmul.f32 %v1221, %v1226
      %v1232 = vmul.f32 %v1222, %v1230
      %v1233 = vadd.f32 %v1218, %v1231
      %v1234 = vadd.f32 %v1219, %v1232
      %s1235 = scalar_lea.vmem %s7, 240
      %v1236 = vld [vmem:[%s1235] sm:$0xff]
      %v1237 = vld [vmem:[%s1235 + $0x8] sm:$0xff]
      %v1238 = vlaneseq
      %v1239 = vshrl.u32 %v1238, 7
      %v1240 = vsub.s32 7, %v1239
      %v1241 = vrot.slane %v1011, %v1240
      %v1242 = vlaneseq
      %v1243 = vshrl.u32 %v1242, 7
      %v1244 = vsub.s32 7, %v1243
      %v1245 = vrot.slane %v1012, %v1244
      %v1246 = vmul.f32 %v1236, %v1241
      %v1247 = vmul.f32 %v1237, %v1245
      %v1248 = vadd.f32 %v1233, %v1246
      %v1249 = vadd.f32 %v1234, %v1247
      %v1250 = vld [vmem:[%s8] sm:$0xff]
      %v1251 = vld [vmem:[%s8 + $0x8] sm:$0xff]
      %v1252 = vld [vmem:[%s8 + $0x10] sm:$0xff]
      %v1253 = vld [vmem:[%s8 + $0x18] sm:$0xff]
      %v1254 = vld [vmem:[%s8 + $0x20] sm:$0xff]
      %v1255 = vld [vmem:[%s8 + $0x28] sm:$0xff]
      %v1256 = vld [vmem:[%s8 + $0x30] sm:$0xff]
      %v1257 = vld [vmem:[%s8 + $0x38] sm:$0xff]
      %v1258 = vld [vmem:[%s8 + $0x40] sm:$0xff]
      %v1259 = vld [vmem:[%s8 + $0x48] sm:$0xff]
      %v1260 = vld [vmem:[%s8 + $0x50] sm:$0xff]
      %v1261 = vld [vmem:[%s8 + $0x58] sm:$0xff]
      %v1262 = vld [vmem:[%s8 + $0x60] sm:$0xff]
      %v1263 = vld [vmem:[%s8 + $0x68] sm:$0xff]
      %v1264 = vld [vmem:[%s8 + $0x70] sm:$0xff]
      %v1265 = vld [vmem:[%s8 + $0x78] sm:$0xff]
      %v1266 = vld [vmem:[%s8 + $0x80] sm:$0xff]
      %v1267 = vld [vmem:[%s8 + $0x88] sm:$0xff]
      %v1268 = vld [vmem:[%s8 + $0x90] sm:$0xff]
      %v1269 = vld [vmem:[%s8 + $0x98] sm:$0xff]
      %v1270 = vld [vmem:[%s8 + $0xa0] sm:$0xff]
      %v1271 = vld [vmem:[%s8 + $0xa8] sm:$0xff]
      %v1272 = vld [vmem:[%s8 + $0xb0] sm:$0xff]
      %v1273 = vld [vmem:[%s8 + $0xb8] sm:$0xff]
      %v1274 = vld [vmem:[%s8 + $0xc0] sm:$0xff]
      %v1275 = vld [vmem:[%s8 + $0xc8] sm:$0xff]
      %v1276 = vld [vmem:[%s8 + $0xd0] sm:$0xff]
      %v1277 = vld [vmem:[%s8 + $0xd8] sm:$0xff]
      %v1278 = vld [vmem:[%s8 + $0xe0] sm:$0xff]
      %v1279 = vld [vmem:[%s8 + $0xe8] sm:$0xff]
      %v1280 = vld [vmem:[%s8 + $0xf0] sm:$0xff]
      %v1281 = vld [vmem:[%s8 + $0xf8] sm:$0xff]
      %v1282 = vld [vmem:[%s9] sm:$0xff]
      %1284 = vset.pattern.permute.xlu0 0
      %1285 = vperm.xlu0 %1284, %v1282
      %v1286 = vpop.permute.xlu0 %1285
      %1288 = vmatprep.subr.mxu0 0.0
      %1289 = vmatpush1.msra.mxu0 %v1265
      %1290 = vmatprep.subr.mxu0 0.0
      %1291 = vmatpush1.msra.mxu0 %v1264
      %1292 = vmatprep.subr.mxu0 0.0
      %1293 = vmatpush1.msra.mxu0 %v1263
      %1294 = vmatprep.subr.mxu0 0.0
      %1295 = vmatpush1.msra.mxu0 %v1262
      %1296 = vmatprep.subr.mxu0 0.0
      %1297 = vmatpush1.msra.mxu0 %v1261
      %1298 = vmatprep.subr.mxu0 0.0
      %1299 = vmatpush1.msra.mxu0 %v1260
      %1300 = vmatprep.subr.mxu0 0.0
      %1301 = vmatpush1.msra.mxu0 %v1259
      %1302 = vmatprep.subr.mxu0 0.0
      %1303 = vmatpush1.msra.mxu0 %v1258
      %1304 = vmatprep.subr.mxu0 0.0
      %1305 = vmatpush1.msra.mxu0 %v1257
      %1306 = vmatprep.subr.mxu0 0.0
      %1307 = vmatpush1.msra.mxu0 %v1256
      %1308 = vmatprep.subr.mxu0 0.0
      %1309 = vmatpush1.msra.mxu0 %v1255
      %1310 = vmatprep.subr.mxu0 0.0
      %1311 = vmatpush1.msra.mxu0 %v1254
      %1312 = vmatprep.subr.mxu0 0.0
      %1313 = vmatpush1.msra.mxu0 %v1253
      %1314 = vmatprep.subr.mxu0 0.0
      %1315 = vmatpush1.msra.mxu0 %v1252
      %1316 = vmatprep.subr.mxu0 0.0
      %1317 = vmatpush1.msra.mxu0 %v1251
      %1318 = vmatprep.subr.mxu0 0.0
      %1319 = vmatpush1.msra.mxu0 %v1250
      %1320 = vmatprep.subr.mxu0 0.0
      %1321 = vmatpush2.msra.mxu0 %v1281
      %1322 = vmatprep.subr.mxu0 0.0
      %1323 = vmatpush2.msra.mxu0 %v1280
      %1324 = vmatprep.subr.mxu0 0.0
      %1325 = vmatpush2.msra.mxu0 %v1279
      %1326 = vmatprep.subr.mxu0 0.0
      %1327 = vmatpush2.msra.mxu0 %v1278
      %1328 = vmatprep.subr.mxu0 0.0
      %1329 = vmatpush2.msra.mxu0 %v1277
      %1330 = vmatprep.subr.mxu0 0.0
      %1331 = vmatpush2.msra.mxu0 %v1276
      %1332 = vmatprep.subr.mxu0 0.0
      %1333 = vmatpush2.msra.mxu0 %v1275
      %1334 = vmatprep.subr.mxu0 0.0
      %1335 = vmatpush2.msra.mxu0 %v1274
      %1336 = vmatprep.subr.mxu0 0.0
      %1337 = vmatpush2.msra.mxu0 %v1273
      %1338 = vmatprep.subr.mxu0 0.0
      %1339 = vmatpush2.msra.mxu0 %v1272
      %1340 = vmatprep.subr.mxu0 0.0
      %1341 = vmatpush2.msra.mxu0 %v1271
      %1342 = vmatprep.subr.mxu0 0.0
      %1343 = vmatpush2.msra.mxu0 %v1270
      %1344 = vmatprep.subr.mxu0 0.0
      %1345 = vmatpush2.msra.mxu0 %v1269
      %1346 = vmatprep.subr.mxu0 0.0
      %1347 = vmatpush2.msra.mxu0 %v1268
      %1348 = vmatprep.subr.mxu0 0.0
      %1349 = vmatpush2.msra.mxu0 %v1267
      %1350 = vmatprep.subr.mxu0 0.0
      %1351 = vmatpush2.msra.mxu0 %v1266
      %1352 = vmatprep.mubr.f32.mxu0 %v1249
      %1353 = vmatmul.mubr.f32.gmra.mxu0 %v1248
      %v1354 = vpop.f32.mrf.mxu0
      %v1355 = vadd.f32 %v1286, %v1354
      %v1356 = vpop.f32.mrf.mxu0
      %1357 = vdwg.mxu0
      %1358 = vst [vmem:[%s359] sm:$0xff] %v1355
      %p1359 = scmp.lt.s32.totalorder %s21, 1
      %s1360 = scalar_select %p1359, %s21, 1
      %s1361 = smul.addr %s1360, 8
      %s1362 = scalar_lea.vmem %s10, %s1361
      // Predicated region
      $region61: #{hand_gesture_cnn_forward.1} parent=59 // pred_check
        %p1363 = pneg %p254
      $region62: #{hand_gesture_cnn_forward.1} parent=59 // pred_check_branch
        %1365 = sbr.rel (%p1363) target = $region64
      $region63: #{hand_gesture_cnn_forward.1} parent=59 // pred_region
        _
      $region64: #{hand_gesture_cnn_forward.1} parent=59 // pred_fallthru
        _
    $region60: #{hand_gesture_cnn_forward.1} parent=5 // pred_fallthru
      _
    %p1366 = scmp.le.s32.totalorder 2, %s16
    // Predicated region
    $region65: #{hand_gesture_cnn_forward.1} parent=5 // pred_check
      %p1367 = pneg %p1366
    $region66: #{hand_gesture_cnn_forward.1} parent=5 // pred_check_branch
      %1369 = sbr.rel (%p1367) target = $region68
    $region67: #{hand_gesture_cnn_forward.1} parent=5 // pred_region
      %s1370 = ssub.s32 %s16, 2
      // Predicated region
      $region69: #{hand_gesture_cnn_forward.1} parent=67 // pred_check
        %p1371 = pneg %p260
      $region70: #{hand_gesture_cnn_forward.1} parent=67 // pred_check_branch
        %1373 = sbr.rel (%p1371) target = $region72
      $region71: #{hand_gesture_cnn_forward.1} parent=67 // pred_region
        %p1374 = scmp.lt.s32.totalorder %s22, 1
        %s1375 = scalar_select %p1374, %s22, 1
        %s1376 = smul.addr %s1375, 8
        %s1377 = scalar_lea.vmem %s10, %s1376
      $region72: #{hand_gesture_cnn_forward.1} parent=67 // pred_fallthru
        _
    $region68: #{hand_gesture_cnn_forward.1} parent=5 // pred_fallthru
      _
  $region6: #{hand_gesture_cnn_forward.1} parent=0 // loop_footer
    %s20 = sadd.s32 1, %s16
  $region7: #{hand_gesture_cnn_forward.1} parent=0 // loop_footer_branch
    %15 = sbr.rel target = $region3
  $region8: #{hand_gesture_cnn_forward.1} parent=0 // loop_exit
    _

</llo_original>
